<compile_context>
chip_gen: v6e
topology: v6e:2x2x1
jax: 0.10.0
libtpu: 0.0.40
codegen_flags: <defaults>
</compile_context>

<pallas_src>
import functools

import jax
import jax.numpy as jnp
from jax.experimental import pallas as pl
from jax.experimental.pallas import tpu as pltpu

EPS = 1e-5


# ---------------------------------------------------------------------------
# Fused kernel: conv1 -> ReLU -> BN1 -> conv2 -> ReLU -> BN2
# Activation layout inside the kernel: rows = B*H (sublanes), lanes = W*C.
# ---------------------------------------------------------------------------
def _fused_block_kernel(x_ref, m1_ref, b1_ref, g1_ref, be1_ref,
                        m2_ref, b2_ref, g2_ref, be2_ref, cavg_ref,
                        o_ref, xp1_ref, xp2_ref, *, B, H, W, Cin, Cout):
    WCin = W * Cin
    WCout = W * Cout
    n = float(B * H * W)  # elements per channel for batch statistics

    def conv3x3(xp_ref, m_ref, K):
        # xp_ref: (B, H+2, K) H-zero-padded rows; m_ref: (3, K, WCout) banded
        # weight matrices (W-padding folded into the band structure).
        acc = jnp.zeros((B * H, WCout), jnp.float32)
        for kh in range(3):
            lhs = xp_ref[:, kh:kh + H, :].reshape(B * H, K)
            acc = acc + jnp.dot(lhs, m_ref[kh],
                                preferred_element_type=jnp.float32)
        return acc

    def batchnorm(y, g_lane, beta_lane):
        # One-pass batch stats; cavg is a 0/1 (WCout, WCout) matrix with
        # cavg[i, j] = 1 iff lanes i and j belong to the same channel, so a
        # single matmul both reduces over W and broadcasts back to lanes.
        s = jnp.sum(y, axis=0, keepdims=True)                       # (1, WCout)
        ss = jnp.sum(y * y, axis=0, keepdims=True)                  # (1, WCout)
        mean = jnp.dot(s, cavg_ref[...],
                       preferred_element_type=jnp.float32) / n
        ex2 = jnp.dot(ss, cavg_ref[...],
                      preferred_element_type=jnp.float32) / n
        var = ex2 - mean * mean                                     # biased var
        inv = jax.lax.rsqrt(var + EPS)
        return (y - mean) * (inv * g_lane) + beta_lane

    # ----- conv1 + bias + ReLU -----
    zrow1 = jnp.zeros((B, 1, WCin), jnp.float32)
    xp1_ref[:, 0:1, :] = zrow1                       # top pad row
    xp1_ref[:, H + 1:H + 2, :] = zrow1               # bottom pad row
    xp1_ref[:, 1:H + 1, :] = x_ref[...]              # interior (lane-aligned)
    y = conv3x3(xp1_ref, m1_ref, WCin) + b1_ref[...]
    y = jnp.maximum(y, 0.0)

    # ----- BN1 (training-mode batch statistics) -----
    y = batchnorm(y, g1_ref[...], be1_ref[...])

    # ----- conv2 + bias + ReLU -----
    zrow2 = jnp.zeros((B, 1, WCout), jnp.float32)
    xp2_ref[:, 0:1, :] = zrow2
    xp2_ref[:, H + 1:H + 2, :] = zrow2
    xp2_ref[:, 1:H + 1, :] = y.reshape(B, H, WCout)
    y = conv3x3(xp2_ref, m2_ref, WCout) + b2_ref[...]
    y = jnp.maximum(y, 0.0)

    # ----- BN2 -----
    y = batchnorm(y, g2_ref[...], be2_ref[...])

    # Lane-dense store: (B*H, W*Cout) = (32, 128).
    o_ref[...] = y.astype(o_ref.dtype)


# ---------------------------------------------------------------------------
# Wrapper-side weight expansion: 3x3 HWIO conv weights -> block-banded matmul
# weights.  m[kh][q*Cin+ci, w*Cout+co] = w[kh, kw, ci, co] where q = w+kw-1,
# and out-of-range q simply has no entry (== implicit zero padding in W).
# ---------------------------------------------------------------------------
def _banded_conv_weights(w_hwio, W):
    cin, cout = w_hwio.shape[2], w_hwio.shape[3]
    mats = []
    for kh in range(3):
        m = jnp.zeros((W * cin, W * cout), w_hwio.dtype)
        for kw in range(3):
            shift_eye = jnp.eye(W, k=1 - kw, dtype=w_hwio.dtype)   # q = w+kw-1
            m = m + jnp.kron(shift_eye, w_hwio[kh, kw])
        mats.append(m)
    return jnp.stack(mats, axis=0)                                  # (3, W*Cin, W*Cout)


# ---------------------------------------------------------------------------
# Full UNetConvBlock forward: NCHW in / NCHW out (like the PyTorch module).
# ---------------------------------------------------------------------------
def unet_conv_block(x_nchw, params):
    B, Cin, H, W = x_nchw.shape
    Cout = params["w1"].shape[-1]
    WCout = W * Cout

    # Layout plumbing (tiny, wrapper-side): NCHW -> (B, H, W*Cin).
    x = jnp.transpose(x_nchw, (0, 2, 3, 1)).reshape(B, H, W * Cin)

    m1 = _banded_conv_weights(params["w1"], W)       # (3, W*Cin,  W*Cout)
    m2 = _banded_conv_weights(params["w2"], W)       # (3, W*Cout, W*Cout)

    # Per-lane (w*Cout + co) replicas of the per-channel vectors.
    b1 = jnp.tile(params["b1"], W).reshape(1, WCout)
    b2 = jnp.tile(params["b2"], W).reshape(1, WCout)
    g1 = jnp.tile(params["gamma1"], W).reshape(1, WCout)
    be1 = jnp.tile(params["beta1"], W).reshape(1, WCout)
    g2 = jnp.tile(params["gamma2"], W).reshape(1, WCout)
    be2 = jnp.tile(params["beta2"], W).reshape(1, WCout)

    # 0/1 channel reduce+broadcast matrix for BN stats.
    cidx = jnp.arange(WCout) % Cout
    cavg = (cidx[:, None] == cidx[None, :]).astype(jnp.float32)     # (WCout, WCout)

    kernel = functools.partial(_fused_block_kernel,
                               B=B, H=H, W=W, Cin=Cin, Cout=Cout)

    out = pl.pallas_call(
        kernel,
        out_shape=jax.ShapeDtypeStruct((B * H, WCout), x_nchw.dtype),
        scratch_shapes=[
            pltpu.VMEM((B, H + 2, W * Cin), jnp.float32),   # padded conv1 input
            pltpu.VMEM((B, H + 2, WCout), jnp.float32),     # padded conv2 input
        ],
    )(x, m1, b1, g1, be1, m2, b2, g2, be2, cavg)

    # Free reshape + tiny transpose back to NCHW.
    return out.reshape(B, H, W, Cout).transpose(0, 3, 1, 2)


# ---------------------------------------------------------------------------
# Pure-JAX reference (correctness check only).
# ---------------------------------------------------------------------------
def _ref_block(x_nchw, params):
    def conv(x, w_hwio, b):
        w_oihw = jnp.transpose(w_hwio, (3, 2, 0, 1))
        y = jax.lax.conv_general_dilated(
            x, w_oihw, (1, 1), "SAME", precision=jax.lax.Precision.HIGHEST)
        return jnp.maximum(y + b[None, :, None, None], 0.0)

    def bn(y, g, be):
        mean = y.mean(axis=(0, 2, 3), keepdims=True)
        var = ((y - mean) ** 2).mean(axis=(0, 2, 3), keepdims=True)
        return (y - mean) / jnp.sqrt(var + EPS) * g[None, :, None, None] \
            + be[None, :, None, None]

    y = conv(x_nchw, params["w1"], params["b1"])
    y = bn(y, params["gamma1"], params["beta1"])
    y = conv(y, params["w2"], params["b2"])
    y = bn(y, params["gamma2"], params["beta2"])
    return y


if __name__ == "__main__":
    # Small shapes consistent with the module: in_size=4, out_size=8.
    B, Cin, Cout, H, W = 2, 4, 8, 16, 16

    key = jax.random.PRNGKey(0)
    ks = jax.random.split(key, 8)

    x = jax.random.normal(ks[0], (B, Cin, H, W), dtype=jnp.float32)
    params = {
        "w1": jax.random.normal(ks[1], (3, 3, Cin, Cout), jnp.float32) * 0.1,
        "b1": jax.random.normal(ks[2], (Cout,), jnp.float32) * 0.1,
        "gamma1": 1.0 + 0.1 * jax.random.normal(ks[3], (Cout,), jnp.float32),
        "beta1": 0.1 * jax.random.normal(ks[4], (Cout,), jnp.float32),
        "w2": jax.random.normal(ks[5], (3, 3, Cout, Cout), jnp.float32) * 0.1,
        "b2": jax.random.normal(ks[6], (Cout,), jnp.float32) * 0.1,
        "gamma2": 1.0 + 0.1 * jax.random.normal(ks[7], (Cout,), jnp.float32),
        "beta2": jnp.zeros((Cout,), jnp.float32),
    }

    out = jax.block_until_ready(jax.jit(unet_conv_block)(x, params))
    ref = jax.block_until_ready(_ref_block(x, params))

    assert out.shape == (B, Cout, H, W), out.shape
    max_err = float(jnp.max(jnp.abs(out - ref)))
    assert jnp.allclose(out, ref, atol=2e-4, rtol=2e-4), max_err

    print("KERNEL_OK")
</pallas_src>

<mosaic_0001>
module attributes {stable_mosaic.version = 11 : i64} {
  func.func @_fused_block_kernel(%arg0: memref<2x16x64xf32, #tpu.memory_space<vmem>>, %arg1: memref<3x64x128xf32, #tpu.memory_space<vmem>>, %arg2: memref<1x128xf32, #tpu.memory_space<vmem>>, %arg3: memref<1x128xf32, #tpu.memory_space<vmem>>, %arg4: memref<1x128xf32, #tpu.memory_space<vmem>>, %arg5: memref<3x128x128xf32, #tpu.memory_space<vmem>>, %arg6: memref<1x128xf32, #tpu.memory_space<vmem>>, %arg7: memref<1x128xf32, #tpu.memory_space<vmem>>, %arg8: memref<1x128xf32, #tpu.memory_space<vmem>>, %arg9: memref<128x128xf32, #tpu.memory_space<vmem>>, %arg10: memref<32x128xf32, #tpu.memory_space<vmem>>, %arg11: memref<2x18x64xf32, #tpu.memory_space<vmem>>, %arg12: memref<2x18x128xf32, #tpu.memory_space<vmem>>) attributes {dimension_semantics = [], scalar_prefetch = 0 : i64, scratch_operands = 2 : i64, tpu.core_type = #tpu.core_type<tc>} {
    %cst = arith.constant 0.000000e+00 : f32
    %0 = vector.broadcast %cst : f32 to vector<2x1x64xf32>
    %c0 = arith.constant 0 : index
    %c0_0 = arith.constant 0 : index
    %c0_1 = arith.constant 0 : index
    %1 = vector.load %arg11[%c0, %c0_0, %c0_1] : memref<2x18x64xf32, #tpu.memory_space<vmem>>, vector<2x1x64xf32>
    tpu.vector_store %arg11[%c0, %c0_0, %c0_1], %0 {strides = array<i32>} : memref<2x18x64xf32, #tpu.memory_space<vmem>>, vector<2x1x64xf32>,
    %c0_2 = arith.constant 0 : index
    %c17 = arith.constant 17 : index
    %c0_3 = arith.constant 0 : index
    %2 = vector.load %arg11[%c0_2, %c17, %c0_3] : memref<2x18x64xf32, #tpu.memory_space<vmem>>, vector<2x1x64xf32>
    tpu.vector_store %arg11[%c0_2, %c17, %c0_3], %0 {strides = array<i32>} : memref<2x18x64xf32, #tpu.memory_space<vmem>>, vector<2x1x64xf32>,
    %c0_4 = arith.constant 0 : index
    %c0_5 = arith.constant 0 : index
    %c0_6 = arith.constant 0 : index
    %3 = vector.load %arg0[%c0_4, %c0_5, %c0_6] : memref<2x16x64xf32, #tpu.memory_space<vmem>>, vector<2x16x64xf32>
    %c0_7 = arith.constant 0 : index
    %c1 = arith.constant 1 : index
    %c0_8 = arith.constant 0 : index
    %4 = vector.load %arg11[%c0_7, %c1, %c0_8] : memref<2x18x64xf32, #tpu.memory_space<vmem>>, vector<2x16x64xf32>
    tpu.vector_store %arg11[%c0_7, %c1, %c0_8], %3 {strides = array<i32>} : memref<2x18x64xf32, #tpu.memory_space<vmem>>, vector<2x16x64xf32>,
    %cst_9 = arith.constant 0.000000e+00 : f32
    %5 = vector.broadcast %cst_9 : f32 to vector<32x128xf32>
    %c0_10 = arith.constant 0 : index
    %c0_11 = arith.constant 0 : index
    %c0_12 = arith.constant 0 : index
    %6 = vector.load %arg11[%c0_10, %c0_11, %c0_12] : memref<2x18x64xf32, #tpu.memory_space<vmem>>, vector<2x16x64xf32>
    %7 = vector.shape_cast %6 : vector<2x16x64xf32> to vector<32x64xf32>
    %c0_13 = arith.constant 0 : index
    %c0_14 = arith.constant 0 : index
    %c0_15 = arith.constant 0 : index
    %8 = vector.load %arg1[%c0_13, %c0_14, %c0_15] : memref<3x64x128xf32, #tpu.memory_space<vmem>>, vector<1x64x128xf32>
    %9 = vector.shape_cast %8 : vector<1x64x128xf32> to vector<64x128xf32>
    %cst_16 = arith.constant dense<0.000000e+00> : vector<32x128xf32>
    %10 = tpu.matmul %7, %9, %cst_16 {dimension_numbers = #tpu.dot_dimension_numbers<[1], [0], [0], [1], [0, 0, 1, 1], [], []>} : vector<32x64xf32>, vector<64x128xf32>, vector<32x128xf32> -> vector<32x128xf32>
    %11 = arith.addf %5, %10 : vector<32x128xf32>
    %c0_17 = arith.constant 0 : index
    %c1_18 = arith.constant 1 : index
    %c0_19 = arith.constant 0 : index
    %12 = vector.load %arg11[%c0_17, %c1_18, %c0_19] : memref<2x18x64xf32, #tpu.memory_space<vmem>>, vector<2x16x64xf32>
    %13 = vector.shape_cast %12 : vector<2x16x64xf32> to vector<32x64xf32>
    %c1_20 = arith.constant 1 : index
    %c0_21 = arith.constant 0 : index
    %c0_22 = arith.constant 0 : index
    %14 = vector.load %arg1[%c1_20, %c0_21, %c0_22] : memref<3x64x128xf32, #tpu.memory_space<vmem>>, vector<1x64x128xf32>
    %15 = vector.shape_cast %14 : vector<1x64x128xf32> to vector<64x128xf32>
    %cst_23 = arith.constant dense<0.000000e+00> : vector<32x128xf32>
    %16 = tpu.matmul %13, %15, %cst_23 {dimension_numbers = #tpu.dot_dimension_numbers<[1], [0], [0], [1], [0, 0, 1, 1], [], []>} : vector<32x64xf32>, vector<64x128xf32>, vector<32x128xf32> -> vector<32x128xf32>
    %17 = arith.addf %11, %16 : vector<32x128xf32>
    %c0_24 = arith.constant 0 : index
    %c2 = arith.constant 2 : index
    %c0_25 = arith.constant 0 : index
    %18 = vector.load %arg11[%c0_24, %c2, %c0_25] : memref<2x18x64xf32, #tpu.memory_space<vmem>>, vector<2x16x64xf32>
    %19 = vector.shape_cast %18 : vector<2x16x64xf32> to vector<32x64xf32>
    %c2_26 = arith.constant 2 : index
    %c0_27 = arith.constant 0 : index
    %c0_28 = arith.constant 0 : index
    %20 = vector.load %arg1[%c2_26, %c0_27, %c0_28] : memref<3x64x128xf32, #tpu.memory_space<vmem>>, vector<1x64x128xf32>
    %21 = vector.shape_cast %20 : vector<1x64x128xf32> to vector<64x128xf32>
    %cst_29 = arith.constant dense<0.000000e+00> : vector<32x128xf32>
    %22 = tpu.matmul %19, %21, %cst_29 {dimension_numbers = #tpu.dot_dimension_numbers<[1], [0], [0], [1], [0, 0, 1, 1], [], []>} : vector<32x64xf32>, vector<64x128xf32>, vector<32x128xf32> -> vector<32x128xf32>
    %23 = arith.addf %17, %22 : vector<32x128xf32>
    %c0_30 = arith.constant 0 : index
    %c0_31 = arith.constant 0 : index
    %24 = vector.load %arg2[%c0_30, %c0_31] : memref<1x128xf32, #tpu.memory_space<vmem>>, vector<1x128xf32>
    %25 = vector.broadcast %24 : vector<1x128xf32> to vector<32x128xf32>
    %26 = arith.addf %23, %25 : vector<32x128xf32>
    %cst_32 = arith.constant 0.000000e+00 : f32
    %27 = vector.broadcast %cst_32 : f32 to vector<32x128xf32>
    %28 = arith.maximumf %26, %27 : vector<32x128xf32>
    %c0_33 = arith.constant 0 : index
    %c0_34 = arith.constant 0 : index
    %29 = vector.load %arg3[%c0_33, %c0_34] : memref<1x128xf32, #tpu.memory_space<vmem>>, vector<1x128xf32>
    %c0_35 = arith.constant 0 : index
    %c0_36 = arith.constant 0 : index
    %30 = vector.load %arg4[%c0_35, %c0_36] : memref<1x128xf32, #tpu.memory_space<vmem>>, vector<1x128xf32>
    %cst_37 = arith.constant dense<0.000000e+00> : vector<128xf32>
    %31 = vector.multi_reduction <add>, %28, %cst_37 [0] : vector<32x128xf32> to vector<128xf32>
    %32 = vector.shape_cast %31 : vector<128xf32> to vector<1x128xf32>
    %33 = arith.mulf %28, %28 : vector<32x128xf32>
    %cst_38 = arith.constant dense<0.000000e+00> : vector<128xf32>
    %34 = vector.multi_reduction <add>, %33, %cst_38 [0] : vector<32x128xf32> to vector<128xf32>
    %35 = vector.shape_cast %34 : vector<128xf32> to vector<1x128xf32>
    %c0_39 = arith.constant 0 : index
    %c0_40 = arith.constant 0 : index
    %36 = vector.load %arg9[%c0_39, %c0_40] : memref<128x128xf32, #tpu.memory_space<vmem>>, vector<128x128xf32>
    %cst_41 = arith.constant dense<0.000000e+00> : vector<1x128xf32>
    %37 = tpu.matmul %32, %36, %cst_41 {dimension_numbers = #tpu.dot_dimension_numbers<[1], [0], [0], [1], [0, 0, 1, 1], [], []>} : vector<1x128xf32>, vector<128x128xf32>, vector<1x128xf32> -> vector<1x128xf32>
    %cst_42 = arith.constant 5.120000e+02 : f32
    %38 = vector.broadcast %cst_42 : f32 to vector<1x128xf32>
    %39 = arith.divf %37, %38 : vector<1x128xf32>
    %c0_43 = arith.constant 0 : index
    %c0_44 = arith.constant 0 : index
    %40 = vector.load %arg9[%c0_43, %c0_44] : memref<128x128xf32, #tpu.memory_space<vmem>>, vector<128x128xf32>
    %cst_45 = arith.constant dense<0.000000e+00> : vector<1x128xf32>
    %41 = tpu.matmul %35, %40, %cst_45 {dimension_numbers = #tpu.dot_dimension_numbers<[1], [0], [0], [1], [0, 0, 1, 1], [], []>} : vector<1x128xf32>, vector<128x128xf32>, vector<1x128xf32> -> vector<1x128xf32>
    %cst_46 = arith.constant 5.120000e+02 : f32
    %42 = vector.broadcast %cst_46 : f32 to vector<1x128xf32>
    %43 = arith.divf %41, %42 : vector<1x128xf32>
    %44 = arith.mulf %39, %39 : vector<1x128xf32>
    %45 = arith.subf %43, %44 : vector<1x128xf32>
    %cst_47 = arith.constant 9.99999974E-6 : f32
    %46 = vector.broadcast %cst_47 : f32 to vector<1x128xf32>
    %47 = arith.addf %45, %46 : vector<1x128xf32>
    %48 = math.rsqrt %47 : vector<1x128xf32>
    %49 = vector.broadcast %39 : vector<1x128xf32> to vector<32x128xf32>
    %50 = arith.subf %28, %49 : vector<32x128xf32>
    %51 = arith.mulf %48, %29 : vector<1x128xf32>
    %52 = vector.broadcast %51 : vector<1x128xf32> to vector<32x128xf32>
    %53 = arith.mulf %50, %52 : vector<32x128xf32>
    %54 = vector.broadcast %30 : vector<1x128xf32> to vector<32x128xf32>
    %55 = arith.addf %53, %54 : vector<32x128xf32>
    %cst_48 = arith.constant 0.000000e+00 : f32
    %56 = vector.broadcast %cst_48 : f32 to vector<2x1x128xf32>
    %c0_49 = arith.constant 0 : index
    %c0_50 = arith.constant 0 : index
    %c0_51 = arith.constant 0 : index
    %57 = vector.load %arg12[%c0_49, %c0_50, %c0_51] : memref<2x18x128xf32, #tpu.memory_space<vmem>>, vector<2x1x128xf32>
    tpu.vector_store %arg12[%c0_49, %c0_50, %c0_51], %56 {strides = array<i32>} : memref<2x18x128xf32, #tpu.memory_space<vmem>>, vector<2x1x128xf32>,
    %c0_52 = arith.constant 0 : index
    %c17_53 = arith.constant 17 : index
    %c0_54 = arith.constant 0 : index
    %58 = vector.load %arg12[%c0_52, %c17_53, %c0_54] : memref<2x18x128xf32, #tpu.memory_space<vmem>>, vector<2x1x128xf32>
    tpu.vector_store %arg12[%c0_52, %c17_53, %c0_54], %56 {strides = array<i32>} : memref<2x18x128xf32, #tpu.memory_space<vmem>>, vector<2x1x128xf32>,
    %59 = vector.shape_cast %55 : vector<32x128xf32> to vector<2x16x128xf32>
    %c0_55 = arith.constant 0 : index
    %c1_56 = arith.constant 1 : index
    %c0_57 = arith.constant 0 : index
    %60 = vector.load %arg12[%c0_55, %c1_56, %c0_57] : memref<2x18x128xf32, #tpu.memory_space<vmem>>, vector<2x16x128xf32>
    tpu.vector_store %arg12[%c0_55, %c1_56, %c0_57], %59 {strides = array<i32>} : memref<2x18x128xf32, #tpu.memory_space<vmem>>, vector<2x16x128xf32>,
    %cst_58 = arith.constant 0.000000e+00 : f32
    %61 = vector.broadcast %cst_58 : f32 to vector<32x128xf32>
    %c0_59 = arith.constant 0 : index
    %c0_60 = arith.constant 0 : index
    %c0_61 = arith.constant 0 : index
    %62 = vector.load %arg12[%c0_59, %c0_60, %c0_61] : memref<2x18x128xf32, #tpu.memory_space<vmem>>, vector<2x16x128xf32>
    %63 = vector.shape_cast %62 : vector<2x16x128xf32> to vector<32x128xf32>
    %c0_62 = arith.constant 0 : index
    %c0_63 = arith.constant 0 : index
    %c0_64 = arith.constant 0 : index
    %64 = vector.load %arg5[%c0_62, %c0_63, %c0_64] : memref<3x128x128xf32, #tpu.memory_space<vmem>>, vector<1x128x128xf32>
    %65 = vector.shape_cast %64 : vector<1x128x128xf32> to vector<128x128xf32>
    %cst_65 = arith.constant dense<0.000000e+00> : vector<32x128xf32>
    %66 = tpu.matmul %63, %65, %cst_65 {dimension_numbers = #tpu.dot_dimension_numbers<[1], [0], [0], [1], [0, 0, 1, 1], [], []>} : vector<32x128xf32>, vector<128x128xf32>, vector<32x128xf32> -> vector<32x128xf32>
    %67 = arith.addf %61, %66 : vector<32x128xf32>
    %c0_66 = arith.constant 0 : index
    %c1_67 = arith.constant 1 : index
    %c0_68 = arith.constant 0 : index
    %68 = vector.load %arg12[%c0_66, %c1_67, %c0_68] : memref<2x18x128xf32, #tpu.memory_space<vmem>>, vector<2x16x128xf32>
    %69 = vector.shape_cast %68 : vector<2x16x128xf32> to vector<32x128xf32>
    %c1_69 = arith.constant 1 : index
    %c0_70 = arith.constant 0 : index
    %c0_71 = arith.constant 0 : index
    %70 = vector.load %arg5[%c1_69, %c0_70, %c0_71] : memref<3x128x128xf32, #tpu.memory_space<vmem>>, vector<1x128x128xf32>
    %71 = vector.shape_cast %70 : vector<1x128x128xf32> to vector<128x128xf32>
    %cst_72 = arith.constant dense<0.000000e+00> : vector<32x128xf32>
    %72 = tpu.matmul %69, %71, %cst_72 {dimension_numbers = #tpu.dot_dimension_numbers<[1], [0], [0], [1], [0, 0, 1, 1], [], []>} : vector<32x128xf32>, vector<128x128xf32>, vector<32x128xf32> -> vector<32x128xf32>
    %73 = arith.addf %67, %72 : vector<32x128xf32>
    %c0_73 = arith.constant 0 : index
    %c2_74 = arith.constant 2 : index
    %c0_75 = arith.constant 0 : index
    %74 = vector.load %arg12[%c0_73, %c2_74, %c0_75] : memref<2x18x128xf32, #tpu.memory_space<vmem>>, vector<2x16x128xf32>
    %75 = vector.shape_cast %74 : vector<2x16x128xf32> to vector<32x128xf32>
    %c2_76 = arith.constant 2 : index
    %c0_77 = arith.constant 0 : index
    %c0_78 = arith.constant 0 : index
    %76 = vector.load %arg5[%c2_76, %c0_77, %c0_78] : memref<3x128x128xf32, #tpu.memory_space<vmem>>, vector<1x128x128xf32>
    %77 = vector.shape_cast %76 : vector<1x128x128xf32> to vector<128x128xf32>
    %cst_79 = arith.constant dense<0.000000e+00> : vector<32x128xf32>
    %78 = tpu.matmul %75, %77, %cst_79 {dimension_numbers = #tpu.dot_dimension_numbers<[1], [0], [0], [1], [0, 0, 1, 1], [], []>} : vector<32x128xf32>, vector<128x128xf32>, vector<32x128xf32> -> vector<32x128xf32>
    %79 = arith.addf %73, %78 : vector<32x128xf32>
    %c0_80 = arith.constant 0 : index
    %c0_81 = arith.constant 0 : index
    %80 = vector.load %arg6[%c0_80, %c0_81] : memref<1x128xf32, #tpu.memory_space<vmem>>, vector<1x128xf32>
    %81 = vector.broadcast %80 : vector<1x128xf32> to vector<32x128xf32>
    %82 = arith.addf %79, %81 : vector<32x128xf32>
    %cst_82 = arith.constant 0.000000e+00 : f32
    %83 = vector.broadcast %cst_82 : f32 to vector<32x128xf32>
    %84 = arith.maximumf %82, %83 : vector<32x128xf32>
    %c0_83 = arith.constant 0 : index
    %c0_84 = arith.constant 0 : index
    %85 = vector.load %arg7[%c0_83, %c0_84] : memref<1x128xf32, #tpu.memory_space<vmem>>, vector<1x128xf32>
    %c0_85 = arith.constant 0 : index
    %c0_86 = arith.constant 0 : index
    %86 = vector.load %arg8[%c0_85, %c0_86] : memref<1x128xf32, #tpu.memory_space<vmem>>, vector<1x128xf32>
    %cst_87 = arith.constant dense<0.000000e+00> : vector<128xf32>
    %87 = vector.multi_reduction <add>, %84, %cst_87 [0] : vector<32x128xf32> to vector<128xf32>
    %88 = vector.shape_cast %87 : vector<128xf32> to vector<1x128xf32>
    %89 = arith.mulf %84, %84 : vector<32x128xf32>
    %cst_88 = arith.constant dense<0.000000e+00> : vector<128xf32>
    %90 = vector.multi_reduction <add>, %89, %cst_88 [0] : vector<32x128xf32> to vector<128xf32>
    %91 = vector.shape_cast %90 : vector<128xf32> to vector<1x128xf32>
    %c0_89 = arith.constant 0 : index
    %c0_90 = arith.constant 0 : index
    %92 = vector.load %arg9[%c0_89, %c0_90] : memref<128x128xf32, #tpu.memory_space<vmem>>, vector<128x128xf32>
    %cst_91 = arith.constant dense<0.000000e+00> : vector<1x128xf32>
    %93 = tpu.matmul %88, %92, %cst_91 {dimension_numbers = #tpu.dot_dimension_numbers<[1], [0], [0], [1], [0, 0, 1, 1], [], []>} : vector<1x128xf32>, vector<128x128xf32>, vector<1x128xf32> -> vector<1x128xf32>
    %cst_92 = arith.constant 5.120000e+02 : f32
    %94 = vector.broadcast %cst_92 : f32 to vector<1x128xf32>
    %95 = arith.divf %93, %94 : vector<1x128xf32>
    %c0_93 = arith.constant 0 : index
    %c0_94 = arith.constant 0 : index
    %96 = vector.load %arg9[%c0_93, %c0_94] : memref<128x128xf32, #tpu.memory_space<vmem>>, vector<128x128xf32>
    %cst_95 = arith.constant dense<0.000000e+00> : vector<1x128xf32>
    %97 = tpu.matmul %91, %96, %cst_95 {dimension_numbers = #tpu.dot_dimension_numbers<[1], [0], [0], [1], [0, 0, 1, 1], [], []>} : vector<1x128xf32>, vector<128x128xf32>, vector<1x128xf32> -> vector<1x128xf32>
    %cst_96 = arith.constant 5.120000e+02 : f32
    %98 = vector.broadcast %cst_96 : f32 to vector<1x128xf32>
    %99 = arith.divf %97, %98 : vector<1x128xf32>
    %100 = arith.mulf %95, %95 : vector<1x128xf32>
    %101 = arith.subf %99, %100 : vector<1x128xf32>
    %cst_97 = arith.constant 9.99999974E-6 : f32
    %102 = vector.broadcast %cst_97 : f32 to vector<1x128xf32>
    %103 = arith.addf %101, %102 : vector<1x128xf32>
    %104 = math.rsqrt %103 : vector<1x128xf32>
    %105 = vector.broadcast %95 : vector<1x128xf32> to vector<32x128xf32>
    %106 = arith.subf %84, %105 : vector<32x128xf32>
    %107 = arith.mulf %104, %85 : vector<1x128xf32>
    %108 = vector.broadcast %107 : vector<1x128xf32> to vector<32x128xf32>
    %109 = arith.mulf %106, %108 : vector<32x128xf32>
    %110 = vector.broadcast %86 : vector<1x128xf32> to vector<32x128xf32>
    %111 = arith.addf %109, %110 : vector<32x128xf32>
    %c0_98 = arith.constant 0 : index
    %c0_99 = arith.constant 0 : index
    %112 = vector.load %arg10[%c0_98, %c0_99] : memref<32x128xf32, #tpu.memory_space<vmem>>, vector<32x128xf32>
    tpu.vector_store %arg10[%c0_98, %c0_99], %111 {strides = array<i32>} : memref<32x128xf32, #tpu.memory_space<vmem>>, vector<32x128xf32>,
    return
  }
}

</mosaic_0001>

<llo_original>
// kernel: tile.33
$region0: #{tile.33}
  #allocation0 [shape = 's32[1]{0}', space=sflag, size = 0x4, scoped, tag = 'scoped memory for tile.33']
  %s0 = inlined_call_operand.vmem [shape: f32[8], index: 0, kind: input, shape index: {}]
  %s1 = inlined_call_operand.vmem [shape: f32[16,8], index: 1, kind: output, shape index: {}]
  // Predicated region
  $region2: #{tile.33} parent=0 // pred_check
    _
  $region3: #{tile.33} parent=0 // pred_check_branch
    %3 = sbr.rel (0) target = $region5
  $region4: #{tile.33} parent=0 // pred_region
    _
  $region5: #{tile.33} parent=0 // pred_fallthru
    _
  %v4 = vld [vmem:[%s0] ss:$0 sm:$0xff]
  %5 = vst [vmem:[%s1] sm:$0xff] %v4
  %s6 = scalar_lea.vmem %s1, 8
  %7 = vst [vmem:[%s6] sm:$0xff] %v4

// kernel: tile.34
$region0: #{tile.34}
  %s0 = inlined_call_operand.vmem [shape: f32[16,8], index: 0, kind: input, shape index: {}]
  %s1 = inlined_call_operand.vmem [shape: f32[1,128], index: 1, kind: output, shape index: {}]
  $region1: #{tile.34} parent=0
    #allocation0 [shape = 'u8[4096]{0}', space=vmem, size = 0x1000, scoped, tag = 'scoped mem for output reshape']
    %v2 = vld [vmem:[%s0] sm:$0x1]
    %vm3 = vcmask 64512
    %4 = vst.msk [vmem:[#allocation0] sm:$0x1] %vm3, %v2
    %s5 = scalar_lea.vmem %s0, 15
    %v6 = vld [vmem:[%s5] sm:$0x1]
    %7 = vrot.lane.b32.xlu0 %v6, 120
    %v8 = vpop.permute.xlu0 %7
    %vm9 = vcmask 1048512
    %10 = vst.msk [vmem:[#allocation0] sm:$0x1] %vm9, %v8
    %s11 = scalar_lea.vmem %s0, 14
    %v12 = vld [vmem:[%s11] sm:$0x1]
    %13 = vrot.lane.b32.xlu0 %v12, 112
    %v14 = vpop.permute.xlu0 %13
    %vm15 = vcmask 982912
    %16 = vst.msk [vmem:[#allocation0] sm:$0x1] %vm15, %v14
    %s17 = scalar_lea.vmem %s0, 13
    %v18 = vld [vmem:[%s17] sm:$0x1]
    %19 = vrot.lane.b32.xlu0 %v18, 104
    %v20 = vpop.permute.xlu0 %19
    %vm21 = vcmask 917312
    %22 = vst.msk [vmem:[#allocation0] sm:$0x1] %vm21, %v20
    %s23 = scalar_lea.vmem %s0, 12
    %v24 = vld [vmem:[%s23] sm:$0x1]
    %25 = vrot.lane.b32.xlu0 %v24, 96
    %v26 = vpop.permute.xlu0 %25
    %vm27 = vcmask 851712
    %28 = vst.msk [vmem:[#allocation0] sm:$0x1] %vm27, %v26
    %s29 = scalar_lea.vmem %s0, 11
    %v30 = vld [vmem:[%s29] sm:$0x1]
    %31 = vrot.lane.b32.xlu0 %v30, 88
    %v32 = vpop.permute.xlu0 %31
    %vm33 = vcmask 786112
    %34 = vst.msk [vmem:[#allocation0] sm:$0x1] %vm33, %v32
    %s35 = scalar_lea.vmem %s0, 10
    %v36 = vld [vmem:[%s35] sm:$0x1]
    %37 = vrot.lane.b32.xlu0 %v36, 80
    %v38 = vpop.permute.xlu0 %37
    %vm39 = vcmask 720512
    %40 = vst.msk [vmem:[#allocation0] sm:$0x1] %vm39, %v38
    %s41 = scalar_lea.vmem %s0, 9
    %v42 = vld [vmem:[%s41] sm:$0x1]
    %43 = vrot.lane.b32.xlu0 %v42, 72
    %v44 = vpop.permute.xlu0 %43
    %vm45 = vcmask 654912
    %46 = vst.msk [vmem:[#allocation0] sm:$0x1] %vm45, %v44
    %s47 = scalar_lea.vmem %s0, 8
    %v48 = vld [vmem:[%s47] sm:$0x1]
    %49 = vrot.lane.b32.xlu0 %v48, 64
    %v50 = vpop.permute.xlu0 %49
    %vm51 = vcmask 589312
    %52 = vst.msk [vmem:[#allocation0] sm:$0x1] %vm51, %v50
    %s53 = scalar_lea.vmem %s0, 7
    %v54 = vld [vmem:[%s53] sm:$0x1]
    %55 = vrot.lane.b32.xlu0 %v54, 56
    %v56 = vpop.permute.xlu0 %55
    %vm57 = vcmask 523712
    %58 = vst.msk [vmem:[#allocation0] sm:$0x1] %vm57, %v56
    %s59 = scalar_lea.vmem %s0, 6
    %v60 = vld [vmem:[%s59] sm:$0x1]
    %61 = vrot.lane.b32.xlu0 %v60, 48
    %v62 = vpop.permute.xlu0 %61
    %vm63 = vcmask 458112
    %64 = vst.msk [vmem:[#allocation0] sm:$0x1] %vm63, %v62
    %s65 = scalar_lea.vmem %s0, 5
    %v66 = vld [vmem:[%s65] sm:$0x1]
    %67 = vrot.lane.b32.xlu0 %v66, 40
    %v68 = vpop.permute.xlu0 %67
    %vm69 = vcmask 392512
    %70 = vst.msk [vmem:[#allocation0] sm:$0x1] %vm69, %v68
    %s71 = scalar_lea.vmem %s0, 4
    %v72 = vld [vmem:[%s71] sm:$0x1]
    %73 = vrot.lane.b32.xlu0 %v72, 32
    %v74 = vpop.permute.xlu0 %73
    %vm75 = vcmask 326912
    %76 = vst.msk [vmem:[#allocation0] sm:$0x1] %vm75, %v74
    %s77 = scalar_lea.vmem %s0, 3
    %v78 = vld [vmem:[%s77] sm:$0x1]
    %79 = vrot.lane.b32.xlu0 %v78, 24
    %v80 = vpop.permute.xlu0 %79
    %vm81 = vcmask 261312
    %82 = vst.msk [vmem:[#allocation0] sm:$0x1] %vm81, %v80
    %s83 = scalar_lea.vmem %s0, 2
    %v84 = vld [vmem:[%s83] sm:$0x1]
    %85 = vrot.lane.b32.xlu0 %v84, 16
    %v86 = vpop.permute.xlu0 %85
    %vm87 = vcmask 195712
    %88 = vst.msk [vmem:[#allocation0] sm:$0x1] %vm87, %v86
    %s89 = scalar_lea.vmem %s0, 1
    %v90 = vld [vmem:[%s89] sm:$0x1]
    %91 = vrot.lane.b32.xlu0 %v90, 8
    %v92 = vpop.permute.xlu0 %91
    %vm93 = vcmask 130112
    %94 = vst.msk [vmem:[#allocation0] sm:$0x1] %vm93, %v92
    %s96 = sshll.u32 1, 1
    %s97 = ssub.s32 %s96, 1
    %v99 = vld [vmem:[#allocation0] sm:%s97]
    %s100 = sshll.u32 1, 1
    %s101 = ssub.s32 %s100, 1
    %102 = vst [vmem:[%s1] sm:%s101] %v99

// kernel: unet_conv_block.1
$region0: #{unet_conv_block.1}
  #allocation0 [shape = 'u32[]', space=smem, size = 0x4, offset = 0x4, fixed_abs, tag = 'smem constant byte address 0x4 - core index']
  #allocation1 [shape = 'u32[144,128]{1,0:T(1,128)}', space=vmem, size = 0x12000, scoped, tag = 'internal scratch']
  #allocation2 [shape = 'f32[2,18,64]{2,1,0:T(8,128)}', space=vmem, size = 0x6000, scoped, tag = 'scratch operand']
  #allocation3 [shape = 'f32[2,18,128]{2,1,0:T(8,128)}', space=vmem, size = 0x6000, scoped, tag = 'scratch operand']
  %s0 = inlined_call_operand.vmem [shape: f32[2,16,64], index: 0, kind: input, shape index: {}]
  %s1 = inlined_call_operand.vmem [shape: f32[3,64,128], index: 1, kind: input, shape index: {}]
  %s2 = inlined_call_operand.vmem [shape: f32[1,128], index: 2, kind: input, shape index: {}]
  %s3 = inlined_call_operand.vmem [shape: f32[1,128], index: 3, kind: input, shape index: {}]
  %s4 = inlined_call_operand.vmem [shape: f32[1,128], index: 4, kind: input, shape index: {}]
  %s5 = inlined_call_operand.vmem [shape: f32[3,128,128], index: 5, kind: input, shape index: {}]
  %s6 = inlined_call_operand.vmem [shape: f32[1,128], index: 6, kind: input, shape index: {}]
  %s7 = inlined_call_operand.vmem [shape: f32[1,128], index: 7, kind: input, shape index: {}]
  %s8 = inlined_call_operand.vmem [shape: f32[1,128], index: 8, kind: input, shape index: {}]
  %s9 = inlined_call_operand.vmem [shape: f32[128,128], index: 9, kind: input, shape index: {}]
  %s10 = inlined_call_operand.vmem [shape: f32[32,128], index: 10, kind: output, shape index: {}]
  %s11 = sld [smem:[#allocation0]]
  $region50: #{unet_conv_block.1} parent=0
    _
  %s13 = ssub.s32 1, %s11
  %s14 = scalar_select 0, %s13, %s11
  // Predicated region
  $region2: #{unet_conv_block.1} parent=0 // pred_check
    _
  $region3: #{unet_conv_block.1} parent=0 // pred_check_branch
    %16 = sbr.rel (0) target = $region5
  $region4: #{unet_conv_block.1} parent=0 // pred_region
    _
  $region5: #{unet_conv_block.1} parent=0 // pred_fallthru
    _
  // Predicated region
  $region6: #{unet_conv_block.1} parent=0 // pred_check
    _
  $region7: #{unet_conv_block.1} parent=0 // pred_check_branch
    %18 = sbr.rel (0) target = $region9
  $region8: #{unet_conv_block.1} parent=0 // pred_region
    _
  $region9: #{unet_conv_block.1} parent=0 // pred_fallthru
    _
  // Predicated region
  $region10: #{unet_conv_block.1} parent=0 // pred_check
    _
  $region11: #{unet_conv_block.1} parent=0 // pred_check_branch
    %20 = sbr.rel (0) target = $region13
  $region12: #{unet_conv_block.1} parent=0 // pred_region
    _
  $region13: #{unet_conv_block.1} parent=0 // pred_fallthru
    _
  // Predicated region
  $region14: #{unet_conv_block.1} parent=0 // pred_check
    _
  $region15: #{unet_conv_block.1} parent=0 // pred_check_branch
    %22 = sbr.rel (0) target = $region17
  $region16: #{unet_conv_block.1} parent=0 // pred_region
    _
  $region17: #{unet_conv_block.1} parent=0 // pred_fallthru
    _
  // Predicated region
  $region18: #{unet_conv_block.1} parent=0 // pred_check
    _
  $region19: #{unet_conv_block.1} parent=0 // pred_check_branch
    %24 = sbr.rel (0) target = $region21
  $region20: #{unet_conv_block.1} parent=0 // pred_region
    _
  $region21: #{unet_conv_block.1} parent=0 // pred_fallthru
    _
  // Predicated region
  $region22: #{unet_conv_block.1} parent=0 // pred_check
    _
  $region23: #{unet_conv_block.1} parent=0 // pred_check_branch
    %26 = sbr.rel (0) target = $region25
  $region24: #{unet_conv_block.1} parent=0 // pred_region
    _
  $region25: #{unet_conv_block.1} parent=0 // pred_fallthru
    _
  // Predicated region
  $region26: #{unet_conv_block.1} parent=0 // pred_check
    _
  $region27: #{unet_conv_block.1} parent=0 // pred_check_branch
    %28 = sbr.rel (0) target = $region29
  $region28: #{unet_conv_block.1} parent=0 // pred_region
    _
  $region29: #{unet_conv_block.1} parent=0 // pred_fallthru
    _
  // Predicated region
  $region30: #{unet_conv_block.1} parent=0 // pred_check
    _
  $region31: #{unet_conv_block.1} parent=0 // pred_check_branch
    %30 = sbr.rel (0) target = $region33
  $region32: #{unet_conv_block.1} parent=0 // pred_region
    _
  $region33: #{unet_conv_block.1} parent=0 // pred_fallthru
    _
  // Predicated region
  $region34: #{unet_conv_block.1} parent=0 // pred_check
    _
  $region35: #{unet_conv_block.1} parent=0 // pred_check_branch
    %32 = sbr.rel (0) target = $region37
  $region36: #{unet_conv_block.1} parent=0 // pred_region
    _
  $region37: #{unet_conv_block.1} parent=0 // pred_fallthru
    _
  // Predicated region
  $region38: #{unet_conv_block.1} parent=0 // pred_check
    _
  $region39: #{unet_conv_block.1} parent=0 // pred_check_branch
    %34 = sbr.rel (0) target = $region41
  $region40: #{unet_conv_block.1} parent=0 // pred_region
    _
  $region41: #{unet_conv_block.1} parent=0 // pred_fallthru
    _
  %vm35 = vcmask 516096
  %36 = vst.msk [vmem:[#allocation2] sm:$0x1] %vm35, 0.0
  %37 = vst.msk [vmem:[#allocation2 + $0x18] sm:$0x1] %vm35, 0.0
  %38 = vst.msk [vmem:[#allocation2 + $0x11] sm:$0x1] %vm35, 0.0
  %39 = vst.msk [vmem:[#allocation2 + $0x29] sm:$0x1] %vm35, 0.0
  %v40 = vld [vmem:[%s0] sm:$0xff]
  %v41 = vld [vmem:[%s0 + $0x8] sm:$0xff]
  %v42 = vld [vmem:[%s0 + $0x10] sm:$0xff]
  %v43 = vld [vmem:[%s0 + $0x18] sm:$0xff]
  %vm44 = vcmask 523264
  %45 = vst.msk [vmem:[#allocation2 + $0x1] sm:$0xff] %vm44, %v40
  %46 = vst.msk [vmem:[#allocation2 + $0x9] sm:$0xff] %vm44, %v41
  %47 = vst.msk [vmem:[#allocation2 + $0x19] sm:$0xff] %vm44, %v42
  %48 = vst.msk [vmem:[#allocation2 + $0x21] sm:$0xff] %vm44, %v43
  %v49 = vld [vmem:[#allocation2] sm:$0xff]
  %v50 = vld [vmem:[#allocation2 + $0x8] sm:$0xff]
  %v51 = vld [vmem:[#allocation2 + $0x18] sm:$0xff]
  %v52 = vld [vmem:[#allocation2 + $0x20] sm:$0xff]
  %v53 = vld [vmem:[%s1] sm:$0xff]
  %v54 = vld [vmem:[%s1 + $0x8] sm:$0xff]
  %v55 = vld [vmem:[%s1 + $0x10] sm:$0xff]
  %v56 = vld [vmem:[%s1 + $0x18] sm:$0xff]
  %v57 = vld [vmem:[%s1 + $0x20] sm:$0xff]
  %v58 = vld [vmem:[%s1 + $0x28] sm:$0xff]
  %v59 = vld [vmem:[%s1 + $0x30] sm:$0xff]
  %v60 = vld [vmem:[%s1 + $0x38] sm:$0xff]
  %v61 = vld [vmem:[#allocation2 + $0x1] sm:$0xff]
  %v62 = vld [vmem:[#allocation2 + $0x9] sm:$0xff]
  %v63 = vld [vmem:[#allocation2 + $0x19] sm:$0xff]
  %v64 = vld [vmem:[#allocation2 + $0x21] sm:$0xff]
  %s65 = scalar_lea.vmem %s1, 64
  %v66 = vld [vmem:[%s65] sm:$0xff]
  %v67 = vld [vmem:[%s65 + $0x8] sm:$0xff]
  %v68 = vld [vmem:[%s65 + $0x10] sm:$0xff]
  %v69 = vld [vmem:[%s65 + $0x18] sm:$0xff]
  %v70 = vld [vmem:[%s65 + $0x20] sm:$0xff]
  %v71 = vld [vmem:[%s65 + $0x28] sm:$0xff]
  %v72 = vld [vmem:[%s65 + $0x30] sm:$0xff]
  %v73 = vld [vmem:[%s65 + $0x38] sm:$0xff]
  %v75 = vsel %vm44, %v61, 0
  %v78 = vsel %vm44, %v62, 0
  %v81 = vsel %vm44, %v63, 0
  %v84 = vsel %vm44, %v64, 0
  %86 = vmatprep.subr.mxu0 0.0
  %87 = vmatpush1.msra.mxu0 0.0
  %88 = vmatprep.subr.mxu0 0.0
  %89 = vmatpush1.msra.mxu0 0.0
  %90 = vmatprep.subr.mxu0 0.0
  %91 = vmatpush1.msra.mxu0 0.0
  %92 = vmatprep.subr.mxu0 0.0
  %93 = vmatpush1.msra.mxu0 0.0
  %94 = vmatprep.subr.mxu0 0.0
  %95 = vmatpush1.msra.mxu0 0.0
  %96 = vmatprep.subr.mxu0 0.0
  %97 = vmatpush1.msra.mxu0 0.0
  %98 = vmatprep.subr.mxu0 0.0
  %99 = vmatpush1.msra.mxu0 0.0
  %100 = vmatprep.subr.mxu0 0.0
  %101 = vmatpush1.msra.mxu0 0.0
  %102 = vmatprep.subr.mxu0 0.0
  %103 = vmatpush1.msra.mxu0 %v73
  %104 = vmatprep.subr.mxu0 0.0
  %105 = vmatpush1.msra.mxu0 %v72
  %106 = vmatprep.subr.mxu0 0.0
  %107 = vmatpush1.msra.mxu0 %v71
  %108 = vmatprep.subr.mxu0 0.0
  %109 = vmatpush1.msra.mxu0 %v70
  %110 = vmatprep.subr.mxu0 0.0
  %111 = vmatpush1.msra.mxu0 %v69
  %112 = vmatprep.subr.mxu0 0.0
  %113 = vmatpush1.msra.mxu0 %v68
  %114 = vmatprep.subr.mxu0 0.0
  %115 = vmatpush1.msra.mxu0 %v67
  %116 = vmatprep.subr.mxu0 0.0
  %117 = vmatpush1.msra.mxu0 %v66
  %118 = vmatprep.subr.mxu0 0.0
  %119 = vmatpush2.msra.mxu0 0.0
  %120 = vmatprep.subr.mxu0 0.0
  %121 = vmatpush2.msra.mxu0 0.0
  %122 = vmatprep.subr.mxu0 0.0
  %123 = vmatpush2.msra.mxu0 0.0
  %124 = vmatprep.subr.mxu0 0.0
  %125 = vmatpush2.msra.mxu0 0.0
  %126 = vmatprep.subr.mxu0 0.0
  %127 = vmatpush2.msra.mxu0 0.0
  %128 = vmatprep.subr.mxu0 0.0
  %129 = vmatpush2.msra.mxu0 0.0
  %130 = vmatprep.subr.mxu0 0.0
  %131 = vmatpush2.msra.mxu0 0.0
  %132 = vmatprep.subr.mxu0 0.0
  %133 = vmatpush2.msra.mxu0 0.0
  %134 = vmatprep.subr.mxu0 0.0
  %135 = vmatpush2.msra.mxu0 0.0
  %136 = vmatprep.subr.mxu0 0.0
  %137 = vmatpush2.msra.mxu0 0.0
  %138 = vmatprep.subr.mxu0 0.0
  %139 = vmatpush2.msra.mxu0 0.0
  %140 = vmatprep.subr.mxu0 0.0
  %141 = vmatpush2.msra.mxu0 0.0
  %142 = vmatprep.subr.mxu0 0.0
  %143 = vmatpush2.msra.mxu0 0.0
  %144 = vmatprep.subr.mxu0 0.0
  %145 = vmatpush2.msra.mxu0 0.0
  %146 = vmatprep.subr.mxu0 0.0
  %147 = vmatpush2.msra.mxu0 0.0
  %148 = vmatprep.subr.mxu0 0.0
  %149 = vmatpush2.msra.mxu0 0.0
  %150 = vmatprep.mubr.f32.mxu0 0.0
  %151 = vmatmul.mubr.f32.gmra.mxu0 %v75
  %v152 = vpop.f32.mrf.mxu0
  %v153 = vadd.f32 0.0, %v152
  %v154 = vpop.f32.mrf.mxu0
  %155 = vmatprep.mubr.f32.mxu0 0.0
  %156 = vmatmul.mubr.f32.gmra.mxu0 %v78
  %v157 = vpop.f32.mrf.mxu0
  %v158 = vadd.f32 0.0, %v157
  %v159 = vpop.f32.mrf.mxu0
  %160 = vmatprep.mubr.f32.mxu0 0.0
  %161 = vmatmul.mubr.f32.gmra.mxu0 %v81
  %v162 = vpop.f32.mrf.mxu0
  %v163 = vadd.f32 0.0, %v162
  %v164 = vpop.f32.mrf.mxu0
  %165 = vmatprep.mubr.f32.mxu0 0.0
  %166 = vmatmul.mubr.f32.gmra.mxu0 %v84
  %v167 = vpop.f32.mrf.mxu0
  %v168 = vadd.f32 0.0, %v167
  %v169 = vpop.f32.mrf.mxu0
  %170 = vdwg.mxu0
  %v172 = vsel %vm44, %v49, 0
  %v175 = vsel %vm44, %v50, 0
  %v178 = vsel %vm44, %v51, 0
  %v181 = vsel %vm44, %v52, 0
  %183 = vmatprep.subr.mxu0 0.0
  %184 = vmatpush1.msra.mxu0 0.0
  %185 = vmatprep.subr.mxu0 0.0
  %186 = vmatpush1.msra.mxu0 0.0
  %187 = vmatprep.subr.mxu0 0.0
  %188 = vmatpush1.msra.mxu0 0.0
  %189 = vmatprep.subr.mxu0 0.0
  %190 = vmatpush1.msra.mxu0 0.0
  %191 = vmatprep.subr.mxu0 0.0
  %192 = vmatpush1.msra.mxu0 0.0
  %193 = vmatprep.subr.mxu0 0.0
  %194 = vmatpush1.msra.mxu0 0.0
  %195 = vmatprep.subr.mxu0 0.0
  %196 = vmatpush1.msra.mxu0 0.0
  %197 = vmatprep.subr.mxu0 0.0
  %198 = vmatpush1.msra.mxu0 0.0
  %199 = vmatprep.subr.mxu0 0.0
  %200 = vmatpush1.msra.mxu0 %v60
  %201 = vmatprep.subr.mxu0 0.0
  %202 = vmatpush1.msra.mxu0 %v59
  %203 = vmatprep.subr.mxu0 0.0
  %204 = vmatpush1.msra.mxu0 %v58
  %205 = vmatprep.subr.mxu0 0.0
  %206 = vmatpush1.msra.mxu0 %v57
  %207 = vmatprep.subr.mxu0 0.0
  %208 = vmatpush1.msra.mxu0 %v56
  %209 = vmatprep.subr.mxu0 0.0
  %210 = vmatpush1.msra.mxu0 %v55
  %211 = vmatprep.subr.mxu0 0.0
  %212 = vmatpush1.msra.mxu0 %v54
  %213 = vmatprep.subr.mxu0 0.0
  %214 = vmatpush1.msra.mxu0 %v53
  %215 = vmatprep.subr.mxu0 0.0
  %216 = vmatpush2.msra.mxu0 0.0
  %217 = vmatprep.subr.mxu0 0.0
  %218 = vmatpush2.msra.mxu0 0.0
  %219 = vmatprep.subr.mxu0 0.0
  %220 = vmatpush2.msra.mxu0 0.0
  %221 = vmatprep.subr.mxu0 0.0
  %222 = vmatpush2.msra.mxu0 0.0
  %223 = vmatprep.subr.mxu0 0.0
  %224 = vmatpush2.msra.mxu0 0.0
  %225 = vmatprep.subr.mxu0 0.0
  %226 = vmatpush2.msra.mxu0 0.0
  %227 = vmatprep.subr.mxu0 0.0
  %228 = vmatpush2.msra.mxu0 0.0
  %229 = vmatprep.subr.mxu0 0.0
  %230 = vmatpush2.msra.mxu0 0.0
  %231 = vmatprep.subr.mxu0 0.0
  %232 = vmatpush2.msra.mxu0 0.0
  %233 = vmatprep.subr.mxu0 0.0
  %234 = vmatpush2.msra.mxu0 0.0
  %235 = vmatprep.subr.mxu0 0.0
  %236 = vmatpush2.msra.mxu0 0.0
  %237 = vmatprep.subr.mxu0 0.0
  %238 = vmatpush2.msra.mxu0 0.0
  %239 = vmatprep.subr.mxu0 0.0
  %240 = vmatpush2.msra.mxu0 0.0
  %241 = vmatprep.subr.mxu0 0.0
  %242 = vmatpush2.msra.mxu0 0.0
  %243 = vmatprep.subr.mxu0 0.0
  %244 = vmatpush2.msra.mxu0 0.0
  %245 = vmatprep.subr.mxu0 0.0
  %246 = vmatpush2.msra.mxu0 0.0
  %247 = vmatprep.mubr.f32.mxu0 0.0
  %248 = vmatmul.mubr.f32.gmra.mxu0 %v172
  %v249 = vpop.f32.mrf.mxu0
  %v250 = vadd.f32 %v153, %v249
  %v251 = vpop.f32.mrf.mxu0
  %252 = vmatprep.mubr.f32.mxu0 0.0
  %253 = vmatmul.mubr.f32.gmra.mxu0 %v175
  %v254 = vpop.f32.mrf.mxu0
  %v255 = vadd.f32 %v158, %v254
  %v256 = vpop.f32.mrf.mxu0
  %257 = vmatprep.mubr.f32.mxu0 0.0
  %258 = vmatmul.mubr.f32.gmra.mxu0 %v178
  %v259 = vpop.f32.mrf.mxu0
  %v260 = vadd.f32 %v163, %v259
  %v261 = vpop.f32.mrf.mxu0
  %262 = vmatprep.mubr.f32.mxu0 0.0
  %263 = vmatmul.mubr.f32.gmra.mxu0 %v181
  %v264 = vpop.f32.mrf.mxu0
  %v265 = vadd.f32 %v168, %v264
  %v266 = vpop.f32.mrf.mxu0
  %267 = vdwg.mxu0
  %v268 = vld [vmem:[#allocation2 + $0x2] sm:$0xff]
  %v269 = vld [vmem:[#allocation2 + $0xa] sm:$0xff]
  %v270 = vld [vmem:[#allocation2 + $0x1a] sm:$0xff]
  %v271 = vld [vmem:[#allocation2 + $0x22] sm:$0xff]
  %s272 = scalar_lea.vmem %s1, 128
  %v273 = vld [vmem:[%s272] sm:$0xff]
  %v274 = vld [vmem:[%s272 + $0x8] sm:$0xff]
  %v275 = vld [vmem:[%s272 + $0x10] sm:$0xff]
  %v276 = vld [vmem:[%s272 + $0x18] sm:$0xff]
  %v277 = vld [vmem:[%s272 + $0x20] sm:$0xff]
  %v278 = vld [vmem:[%s272 + $0x28] sm:$0xff]
  %v279 = vld [vmem:[%s272 + $0x30] sm:$0xff]
  %v280 = vld [vmem:[%s272 + $0x38] sm:$0xff]
  %v282 = vsel %vm44, %v268, 0
  %v285 = vsel %vm44, %v269, 0
  %v288 = vsel %vm44, %v270, 0
  %v291 = vsel %vm44, %v271, 0
  %293 = vmatprep.subr.mxu0 0.0
  %294 = vmatpush1.msra.mxu0 0.0
  %295 = vmatprep.subr.mxu0 0.0
  %296 = vmatpush1.msra.mxu0 0.0
  %297 = vmatprep.subr.mxu0 0.0
  %298 = vmatpush1.msra.mxu0 0.0
  %299 = vmatprep.subr.mxu0 0.0
  %300 = vmatpush1.msra.mxu0 0.0
  %301 = vmatprep.subr.mxu0 0.0
  %302 = vmatpush1.msra.mxu0 0.0
  %303 = vmatprep.subr.mxu0 0.0
  %304 = vmatpush1.msra.mxu0 0.0
  %305 = vmatprep.subr.mxu0 0.0
  %306 = vmatpush1.msra.mxu0 0.0
  %307 = vmatprep.subr.mxu0 0.0
  %308 = vmatpush1.msra.mxu0 0.0
  %309 = vmatprep.subr.mxu0 0.0
  %310 = vmatpush1.msra.mxu0 %v280
  %311 = vmatprep.subr.mxu0 0.0
  %312 = vmatpush1.msra.mxu0 %v279
  %313 = vmatprep.subr.mxu0 0.0
  %314 = vmatpush1.msra.mxu0 %v278
  %315 = vmatprep.subr.mxu0 0.0
  %316 = vmatpush1.msra.mxu0 %v277
  %317 = vmatprep.subr.mxu0 0.0
  %318 = vmatpush1.msra.mxu0 %v276
  %319 = vmatprep.subr.mxu0 0.0
  %320 = vmatpush1.msra.mxu0 %v275
  %321 = vmatprep.subr.mxu0 0.0
  %322 = vmatpush1.msra.mxu0 %v274
  %323 = vmatprep.subr.mxu0 0.0
  %324 = vmatpush1.msra.mxu0 %v273
  %325 = vmatprep.subr.mxu0 0.0
  %326 = vmatpush2.msra.mxu0 0.0
  %327 = vmatprep.subr.mxu0 0.0
  %328 = vmatpush2.msra.mxu0 0.0
  %329 = vmatprep.subr.mxu0 0.0
  %330 = vmatpush2.msra.mxu0 0.0
  %331 = vmatprep.subr.mxu0 0.0
  %332 = vmatpush2.msra.mxu0 0.0
  %333 = vmatprep.subr.mxu0 0.0
  %334 = vmatpush2.msra.mxu0 0.0
  %335 = vmatprep.subr.mxu0 0.0
  %336 = vmatpush2.msra.mxu0 0.0
  %337 = vmatprep.subr.mxu0 0.0
  %338 = vmatpush2.msra.mxu0 0.0
  %339 = vmatprep.subr.mxu0 0.0
  %340 = vmatpush2.msra.mxu0 0.0
  %341 = vmatprep.subr.mxu0 0.0
  %342 = vmatpush2.msra.mxu0 0.0
  %343 = vmatprep.subr.mxu0 0.0
  %344 = vmatpush2.msra.mxu0 0.0
  %345 = vmatprep.subr.mxu0 0.0
  %346 = vmatpush2.msra.mxu0 0.0
  %347 = vmatprep.subr.mxu0 0.0
  %348 = vmatpush2.msra.mxu0 0.0
  %349 = vmatprep.subr.mxu0 0.0
  %350 = vmatpush2.msra.mxu0 0.0
  %351 = vmatprep.subr.mxu0 0.0
  %352 = vmatpush2.msra.mxu0 0.0
  %353 = vmatprep.subr.mxu0 0.0
  %354 = vmatpush2.msra.mxu0 0.0
  %355 = vmatprep.subr.mxu0 0.0
  %356 = vmatpush2.msra.mxu0 0.0
  %357 = vmatprep.mubr.f32.mxu0 0.0
  %358 = vmatmul.mubr.f32.gmra.mxu0 %v282
  %v359 = vpop.f32.mrf.mxu0
  %v360 = vadd.f32 0.0, %v359
  %v361 = vpop.f32.mrf.mxu0
  %362 = vmatprep.mubr.f32.mxu0 0.0
  %363 = vmatmul.mubr.f32.gmra.mxu0 %v285
  %v364 = vpop.f32.mrf.mxu0
  %v365 = vadd.f32 0.0, %v364
  %v366 = vpop.f32.mrf.mxu0
  %367 = vmatprep.mubr.f32.mxu0 0.0
  %368 = vmatmul.mubr.f32.gmra.mxu0 %v288
  %v369 = vpop.f32.mrf.mxu0
  %v370 = vadd.f32 0.0, %v369
  %v371 = vpop.f32.mrf.mxu0
  %372 = vmatprep.mubr.f32.mxu0 0.0
  %373 = vmatmul.mubr.f32.gmra.mxu0 %v291
  %v374 = vpop.f32.mrf.mxu0
  %v375 = vadd.f32 0.0, %v374
  %v376 = vpop.f32.mrf.mxu0
  %377 = vdwg.mxu0
  %v378 = vadd.f32 %v250, %v360
  %v379 = vadd.f32 %v255, %v365
  %v380 = vadd.f32 %v260, %v370
  %v381 = vadd.f32 %v265, %v375
  %v382 = vld [vmem:[%s2] sm:$0x1]
  %v384 = vlaneseq
  %v385 = vshrl.u32 %v384, 7
  %v386 = vsub.s32 0, %v385
  %v387 = vrot.slane %v382, %v386
  %v389 = vadd.f32 %v378, %v387
  %v390 = vadd.f32 %v379, %v387
  %v391 = vadd.f32 %v380, %v387
  %v392 = vadd.f32 %v381, %v387
  %v393 = vmax.f32 %v389, 0.0
  %v394 = vmax.f32 %v390, 0.0
  %v395 = vmax.f32 %v391, 0.0
  %v396 = vmax.f32 %v392, 0.0
  %v397 = vld [vmem:[%s3] sm:$0x1]
  %v398 = vld [vmem:[%s4] sm:$0x1]
  %v399 = vadd.f32 %v393, %v394
  %v400 = vadd.f32 %v399, %v395
  %v401 = vadd.f32 %v400, %v396
  %v402 = vrot.slane %v401, 4
  %v403 = vadd.f32 %v401, %v402
  %v404 = vrot.slane %v403, 2
  %v405 = vadd.f32 %v403, %v404
  %v406 = vrot.slane %v405, 1
  %v407 = vadd.f32 %v405, %v406
  %v408 = vmul.f32 %v393, %v393
  %v409 = vmul.f32 %v394, %v394
  %v410 = vmul.f32 %v395, %v395
  %v411 = vmul.f32 %v396, %v396
  %v412 = vadd.f32 %v408, %v409
  %v413 = vadd.f32 %v412, %v410
  %v414 = vadd.f32 %v413, %v411
  %v415 = vrot.slane %v414, 4
  %v416 = vadd.f32 %v414, %v415
  %v417 = vrot.slane %v416, 2
  %v418 = vadd.f32 %v416, %v417
  %v419 = vrot.slane %v418, 1
  %v420 = vadd.f32 %v418, %v419
  %v421 = vld [vmem:[%s9] sm:$0xff]
  %v422 = vld [vmem:[%s9 + $0x8] sm:$0xff]
  %v423 = vld [vmem:[%s9 + $0x10] sm:$0xff]
  %v424 = vld [vmem:[%s9 + $0x18] sm:$0xff]
  %v425 = vld [vmem:[%s9 + $0x20] sm:$0xff]
  %v426 = vld [vmem:[%s9 + $0x28] sm:$0xff]
  %v427 = vld [vmem:[%s9 + $0x30] sm:$0xff]
  %v428 = vld [vmem:[%s9 + $0x38] sm:$0xff]
  %v429 = vld [vmem:[%s9 + $0x40] sm:$0xff]
  %v430 = vld [vmem:[%s9 + $0x48] sm:$0xff]
  %v431 = vld [vmem:[%s9 + $0x50] sm:$0xff]
  %v432 = vld [vmem:[%s9 + $0x58] sm:$0xff]
  %v433 = vld [vmem:[%s9 + $0x60] sm:$0xff]
  %v434 = vld [vmem:[%s9 + $0x68] sm:$0xff]
  %v435 = vld [vmem:[%s9 + $0x70] sm:$0xff]
  %v436 = vld [vmem:[%s9 + $0x78] sm:$0xff]
  %437 = vmatprep.subr.mxu0 0.0
  %438 = vmatpush1.msra.mxu0 %v436
  %439 = vmatprep.subr.mxu0 0.0
  %440 = vmatpush1.msra.mxu0 %v435
  %441 = vmatprep.subr.mxu0 0.0
  %442 = vmatpush1.msra.mxu0 %v434
  %443 = vmatprep.subr.mxu0 0.0
  %444 = vmatpush1.msra.mxu0 %v433
  %445 = vmatprep.subr.mxu0 0.0
  %446 = vmatpush1.msra.mxu0 %v432
  %447 = vmatprep.subr.mxu0 0.0
  %448 = vmatpush1.msra.mxu0 %v431
  %449 = vmatprep.subr.mxu0 0.0
  %450 = vmatpush1.msra.mxu0 %v430
  %451 = vmatprep.subr.mxu0 0.0
  %452 = vmatpush1.msra.mxu0 %v429
  %453 = vmatprep.subr.mxu0 0.0
  %454 = vmatpush1.msra.mxu0 %v428
  %455 = vmatprep.subr.mxu0 0.0
  %456 = vmatpush1.msra.mxu0 %v427
  %457 = vmatprep.subr.mxu0 0.0
  %458 = vmatpush1.msra.mxu0 %v426
  %459 = vmatprep.subr.mxu0 0.0
  %460 = vmatpush1.msra.mxu0 %v425
  %461 = vmatprep.subr.mxu0 0.0
  %462 = vmatpush1.msra.mxu0 %v424
  %463 = vmatprep.subr.mxu0 0.0
  %464 = vmatpush1.msra.mxu0 %v423
  %465 = vmatprep.subr.mxu0 0.0
  %466 = vmatpush1.msra.mxu0 %v422
  %467 = vmatprep.subr.mxu0 0.0
  %468 = vmatpush1.msra.mxu0 %v421
  %469 = vmatprep.subr.mxu0 0.0
  %470 = vmatpush2.msra.mxu0 0.0
  %471 = vmatprep.subr.mxu0 0.0
  %472 = vmatpush2.msra.mxu0 0.0
  %473 = vmatprep.subr.mxu0 0.0
  %474 = vmatpush2.msra.mxu0 0.0
  %475 = vmatprep.subr.mxu0 0.0
  %476 = vmatpush2.msra.mxu0 0.0
  %477 = vmatprep.subr.mxu0 0.0
  %478 = vmatpush2.msra.mxu0 0.0
  %479 = vmatprep.subr.mxu0 0.0
  %480 = vmatpush2.msra.mxu0 0.0
  %481 = vmatprep.subr.mxu0 0.0
  %482 = vmatpush2.msra.mxu0 0.0
  %483 = vmatprep.subr.mxu0 0.0
  %484 = vmatpush2.msra.mxu0 0.0
  %485 = vmatprep.subr.mxu0 0.0
  %486 = vmatpush2.msra.mxu0 0.0
  %487 = vmatprep.subr.mxu0 0.0
  %488 = vmatpush2.msra.mxu0 0.0
  %489 = vmatprep.subr.mxu0 0.0
  %490 = vmatpush2.msra.mxu0 0.0
  %491 = vmatprep.subr.mxu0 0.0
  %492 = vmatpush2.msra.mxu0 0.0
  %493 = vmatprep.subr.mxu0 0.0
  %494 = vmatpush2.msra.mxu0 0.0
  %495 = vmatprep.subr.mxu0 0.0
  %496 = vmatpush2.msra.mxu0 0.0
  %497 = vmatprep.subr.mxu0 0.0
  %498 = vmatpush2.msra.mxu0 0.0
  %499 = vmatprep.subr.mxu0 0.0
  %500 = vmatpush2.msra.mxu0 0.0
  %501 = vmatprep.mubr.f32.mxu0 0.0
  %502 = vmatmul.mubr.f32.gmra.mxu0 %v407
  %v503 = vpop.f32.mrf.mxu0
  %v504 = vadd.f32 0.0, %v503
  %v505 = vpop.f32.mrf.mxu0
  %506 = vdwg.mxu0
  %v507 = vrcp.pop 512.0
  %v508 = vmul.f32 %v504, %v507
  %509 = vmatprep.subr.mxu0 0.0
  %510 = vmatpush1.msra.mxu0 %v436
  %511 = vmatprep.subr.mxu0 0.0
  %512 = vmatpush1.msra.mxu0 %v435
  %513 = vmatprep.subr.mxu0 0.0
  %514 = vmatpush1.msra.mxu0 %v434
  %515 = vmatprep.subr.mxu0 0.0
  %516 = vmatpush1.msra.mxu0 %v433
  %517 = vmatprep.subr.mxu0 0.0
  %518 = vmatpush1.msra.mxu0 %v432
  %519 = vmatprep.subr.mxu0 0.0
  %520 = vmatpush1.msra.mxu0 %v431
  %521 = vmatprep.subr.mxu0 0.0
  %522 = vmatpush1.msra.mxu0 %v430
  %523 = vmatprep.subr.mxu0 0.0
  %524 = vmatpush1.msra.mxu0 %v429
  %525 = vmatprep.subr.mxu0 0.0
  %526 = vmatpush1.msra.mxu0 %v428
  %527 = vmatprep.subr.mxu0 0.0
  %528 = vmatpush1.msra.mxu0 %v427
  %529 = vmatprep.subr.mxu0 0.0
  %530 = vmatpush1.msra.mxu0 %v426
  %531 = vmatprep.subr.mxu0 0.0
  %532 = vmatpush1.msra.mxu0 %v425
  %533 = vmatprep.subr.mxu0 0.0
  %534 = vmatpush1.msra.mxu0 %v424
  %535 = vmatprep.subr.mxu0 0.0
  %536 = vmatpush1.msra.mxu0 %v423
  %537 = vmatprep.subr.mxu0 0.0
  %538 = vmatpush1.msra.mxu0 %v422
  %539 = vmatprep.subr.mxu0 0.0
  %540 = vmatpush1.msra.mxu0 %v421
  %541 = vmatprep.subr.mxu0 0.0
  %542 = vmatpush2.msra.mxu0 0.0
  %543 = vmatprep.subr.mxu0 0.0
  %544 = vmatpush2.msra.mxu0 0.0
  %545 = vmatprep.subr.mxu0 0.0
  %546 = vmatpush2.msra.mxu0 0.0
  %547 = vmatprep.subr.mxu0 0.0
  %548 = vmatpush2.msra.mxu0 0.0
  %549 = vmatprep.subr.mxu0 0.0
  %550 = vmatpush2.msra.mxu0 0.0
  %551 = vmatprep.subr.mxu0 0.0
  %552 = vmatpush2.msra.mxu0 0.0
  %553 = vmatprep.subr.mxu0 0.0
  %554 = vmatpush2.msra.mxu0 0.0
  %555 = vmatprep.subr.mxu0 0.0
  %556 = vmatpush2.msra.mxu0 0.0
  %557 = vmatprep.subr.mxu0 0.0
  %558 = vmatpush2.msra.mxu0 0.0
  %559 = vmatprep.subr.mxu0 0.0
  %560 = vmatpush2.msra.mxu0 0.0
  %561 = vmatprep.subr.mxu0 0.0
  %562 = vmatpush2.msra.mxu0 0.0
  %563 = vmatprep.subr.mxu0 0.0
  %564 = vmatpush2.msra.mxu0 0.0
  %565 = vmatprep.subr.mxu0 0.0
  %566 = vmatpush2.msra.mxu0 0.0
  %567 = vmatprep.subr.mxu0 0.0
  %568 = vmatpush2.msra.mxu0 0.0
  %569 = vmatprep.subr.mxu0 0.0
  %570 = vmatpush2.msra.mxu0 0.0
  %571 = vmatprep.subr.mxu0 0.0
  %572 = vmatpush2.msra.mxu0 0.0
  %573 = vmatprep.mubr.f32.mxu0 0.0
  %574 = vmatmul.mubr.f32.gmra.mxu0 %v420
  %v575 = vpop.f32.mrf.mxu0
  %v576 = vadd.f32 0.0, %v575
  %v577 = vpop.f32.mrf.mxu0
  %578 = vdwg.mxu0
  %v579 = vmul.f32 %v576, %v507
  %v580 = vmul.f32 %v508, %v508
  %v581 = vsub.f32 %v579, %v580
  %v582 = vadd.f32 %v581, 1e-05
  %v583 = vrsqrt.pop %v582
  %v584 = vlaneseq
  %v585 = vshrl.u32 %v584, 7
  %v586 = vsub.s32 0, %v585
  %v587 = vrot.slane %v508, %v586
  %v588 = vsub.f32 %v393, %v587
  %v589 = vsub.f32 %v394, %v587
  %v590 = vsub.f32 %v395, %v587
  %v591 = vsub.f32 %v396, %v587
  %v592 = vmul.f32 %v583, %v397
  %v593 = vlaneseq
  %v594 = vshrl.u32 %v593, 7
  %v595 = vsub.s32 0, %v594
  %v596 = vrot.slane %v592, %v595
  %v597 = vmul.f32 %v588, %v596
  %v598 = vmul.f32 %v589, %v596
  %v599 = vmul.f32 %v590, %v596
  %v600 = vmul.f32 %v591, %v596
  %v602 = vlaneseq
  %v603 = vshrl.u32 %v602, 7
  %v604 = vsub.s32 0, %v603
  %v605 = vrot.slane %v398, %v604
  %v607 = vadd.f32 %v597, %v605
  %v608 = vadd.f32 %v598, %v605
  %v609 = vadd.f32 %v599, %v605
  %v610 = vadd.f32 %v600, %v605
  %611 = vst [vmem:[#allocation3] sm:$0x1] 0.0
  %612 = vst [vmem:[#allocation3 + $0x18] sm:$0x1] 0.0
  %613 = vst [vmem:[#allocation3 + $0x11] sm:$0x1] 0.0
  %614 = vst [vmem:[#allocation3 + $0x29] sm:$0x1] 0.0
  %615 = vst [vmem:[#allocation3 + $0x1] sm:$0xff] %v607
  %616 = vst [vmem:[#allocation3 + $0x9] sm:$0xff] %v608
  %617 = vst [vmem:[#allocation3 + $0x19] sm:$0xff] %v609
  %618 = vst [vmem:[#allocation3 + $0x21] sm:$0xff] %v610
  %v619 = vld [vmem:[#allocation3] sm:$0xff]
  %v620 = vld [vmem:[#allocation3 + $0x8] sm:$0xff]
  %v621 = vld [vmem:[#allocation3 + $0x18] sm:$0xff]
  %v622 = vld [vmem:[#allocation3 + $0x20] sm:$0xff]
  %v623 = vld [vmem:[%s5] sm:$0xff]
  %v624 = vld [vmem:[%s5 + $0x8] sm:$0xff]
  %v625 = vld [vmem:[%s5 + $0x10] sm:$0xff]
  %v626 = vld [vmem:[%s5 + $0x18] sm:$0xff]
  %v627 = vld [vmem:[%s5 + $0x20] sm:$0xff]
  %v628 = vld [vmem:[%s5 + $0x28] sm:$0xff]
  %v629 = vld [vmem:[%s5 + $0x30] sm:$0xff]
  %v630 = vld [vmem:[%s5 + $0x38] sm:$0xff]
  %v631 = vld [vmem:[%s5 + $0x40] sm:$0xff]
  %v632 = vld [vmem:[%s5 + $0x48] sm:$0xff]
  %v633 = vld [vmem:[%s5 + $0x50] sm:$0xff]
  %v634 = vld [vmem:[%s5 + $0x58] sm:$0xff]
  %v635 = vld [vmem:[%s5 + $0x60] sm:$0xff]
  %v636 = vld [vmem:[%s5 + $0x68] sm:$0xff]
  %v637 = vld [vmem:[%s5 + $0x70] sm:$0xff]
  %v638 = vld [vmem:[%s5 + $0x78] sm:$0xff]
  %v639 = vld [vmem:[#allocation3 + $0x1] sm:$0xff]
  %v640 = vld [vmem:[#allocation3 + $0x9] sm:$0xff]
  %v641 = vld [vmem:[#allocation3 + $0x19] sm:$0xff]
  %v642 = vld [vmem:[#allocation3 + $0x21] sm:$0xff]
  %s643 = scalar_lea.vmem %s5, 128
  %v644 = vld [vmem:[%s643] sm:$0xff]
  %v645 = vld [vmem:[%s643 + $0x8] sm:$0xff]
  %v646 = vld [vmem:[%s643 + $0x10] sm:$0xff]
  %v647 = vld [vmem:[%s643 + $0x18] sm:$0xff]
  %v648 = vld [vmem:[%s643 + $0x20] sm:$0xff]
  %v649 = vld [vmem:[%s643 + $0x28] sm:$0xff]
  %v650 = vld [vmem:[%s643 + $0x30] sm:$0xff]
  %v651 = vld [vmem:[%s643 + $0x38] sm:$0xff]
  %v652 = vld [vmem:[%s643 + $0x40] sm:$0xff]
  %v653 = vld [vmem:[%s643 + $0x48] sm:$0xff]
  %v654 = vld [vmem:[%s643 + $0x50] sm:$0xff]
  %v655 = vld [vmem:[%s643 + $0x58] sm:$0xff]
  %v656 = vld [vmem:[%s643 + $0x60] sm:$0xff]
  %v657 = vld [vmem:[%s643 + $0x68] sm:$0xff]
  %v658 = vld [vmem:[%s643 + $0x70] sm:$0xff]
  %v659 = vld [vmem:[%s643 + $0x78] sm:$0xff]
  %660 = vmatprep.subr.mxu0 0.0
  %661 = vmatpush1.msra.mxu0 %v659
  %662 = vmatprep.subr.mxu0 0.0
  %663 = vmatpush1.msra.mxu0 %v658
  %664 = vmatprep.subr.mxu0 0.0
  %665 = vmatpush1.msra.mxu0 %v657
  %666 = vmatprep.subr.mxu0 0.0
  %667 = vmatpush1.msra.mxu0 %v656
  %668 = vmatprep.subr.mxu0 0.0
  %669 = vmatpush1.msra.mxu0 %v655
  %670 = vmatprep.subr.mxu0 0.0
  %671 = vmatpush1.msra.mxu0 %v654
  %672 = vmatprep.subr.mxu0 0.0
  %673 = vmatpush1.msra.mxu0 %v653
  %674 = vmatprep.subr.mxu0 0.0
  %675 = vmatpush1.msra.mxu0 %v652
  %676 = vmatprep.subr.mxu0 0.0
  %677 = vmatpush1.msra.mxu0 %v651
  %678 = vmatprep.subr.mxu0 0.0
  %679 = vmatpush1.msra.mxu0 %v650
  %680 = vmatprep.subr.mxu0 0.0
  %681 = vmatpush1.msra.mxu0 %v649
  %682 = vmatprep.subr.mxu0 0.0
  %683 = vmatpush1.msra.mxu0 %v648
  %684 = vmatprep.subr.mxu0 0.0
  %685 = vmatpush1.msra.mxu0 %v647
  %686 = vmatprep.subr.mxu0 0.0
  %687 = vmatpush1.msra.mxu0 %v646
  %688 = vmatprep.subr.mxu0 0.0
  %689 = vmatpush1.msra.mxu0 %v645
  %690 = vmatprep.subr.mxu0 0.0
  %691 = vmatpush1.msra.mxu0 %v644
  %692 = vmatprep.subr.mxu0 0.0
  %693 = vmatpush2.msra.mxu0 0.0
  %694 = vmatprep.subr.mxu0 0.0
  %695 = vmatpush2.msra.mxu0 0.0
  %696 = vmatprep.subr.mxu0 0.0
  %697 = vmatpush2.msra.mxu0 0.0
  %698 = vmatprep.subr.mxu0 0.0
  %699 = vmatpush2.msra.mxu0 0.0
  %700 = vmatprep.subr.mxu0 0.0
  %701 = vmatpush2.msra.mxu0 0.0
  %702 = vmatprep.subr.mxu0 0.0
  %703 = vmatpush2.msra.mxu0 0.0
  %704 = vmatprep.subr.mxu0 0.0
  %705 = vmatpush2.msra.mxu0 0.0
  %706 = vmatprep.subr.mxu0 0.0
  %707 = vmatpush2.msra.mxu0 0.0
  %708 = vmatprep.subr.mxu0 0.0
  %709 = vmatpush2.msra.mxu0 0.0
  %710 = vmatprep.subr.mxu0 0.0
  %711 = vmatpush2.msra.mxu0 0.0
  %712 = vmatprep.subr.mxu0 0.0
  %713 = vmatpush2.msra.mxu0 0.0
  %714 = vmatprep.subr.mxu0 0.0
  %715 = vmatpush2.msra.mxu0 0.0
  %716 = vmatprep.subr.mxu0 0.0
  %717 = vmatpush2.msra.mxu0 0.0
  %718 = vmatprep.subr.mxu0 0.0
  %719 = vmatpush2.msra.mxu0 0.0
  %720 = vmatprep.subr.mxu0 0.0
  %721 = vmatpush2.msra.mxu0 0.0
  %722 = vmatprep.subr.mxu0 0.0
  %723 = vmatpush2.msra.mxu0 0.0
  %724 = vmatprep.mubr.f32.mxu0 0.0
  %725 = vmatmul.mubr.f32.gmra.mxu0 %v639
  %v726 = vpop.f32.mrf.mxu0
  %v727 = vadd.f32 0.0, %v726
  %v728 = vpop.f32.mrf.mxu0
  %729 = vmatprep.mubr.f32.mxu0 0.0
  %730 = vmatmul.mubr.f32.gmra.mxu0 %v640
  %v731 = vpop.f32.mrf.mxu0
  %v732 = vadd.f32 0.0, %v731
  %v733 = vpop.f32.mrf.mxu0
  %734 = vmatprep.mubr.f32.mxu0 0.0
  %735 = vmatmul.mubr.f32.gmra.mxu0 %v641
  %v736 = vpop.f32.mrf.mxu0
  %v737 = vadd.f32 0.0, %v736
  %v738 = vpop.f32.mrf.mxu0
  %739 = vmatprep.mubr.f32.mxu0 0.0
  %740 = vmatmul.mubr.f32.gmra.mxu0 %v642
  %v741 = vpop.f32.mrf.mxu0
  %v742 = vadd.f32 0.0, %v741
  %v743 = vpop.f32.mrf.mxu0
  %744 = vdwg.mxu0
  %745 = vmatprep.subr.mxu0 0.0
  %746 = vmatpush1.msra.mxu0 %v638
  %747 = vmatprep.subr.mxu0 0.0
  %748 = vmatpush1.msra.mxu0 %v637
  %749 = vmatprep.subr.mxu0 0.0
  %750 = vmatpush1.msra.mxu0 %v636
  %751 = vmatprep.subr.mxu0 0.0
  %752 = vmatpush1.msra.mxu0 %v635
  %753 = vmatprep.subr.mxu0 0.0
  %754 = vmatpush1.msra.mxu0 %v634
  %755 = vmatprep.subr.mxu0 0.0
  %756 = vmatpush1.msra.mxu0 %v633
  %757 = vmatprep.subr.mxu0 0.0
  %758 = vmatpush1.msra.mxu0 %v632
  %759 = vmatprep.subr.mxu0 0.0
  %760 = vmatpush1.msra.mxu0 %v631
  %761 = vmatprep.subr.mxu0 0.0
  %762 = vmatpush1.msra.mxu0 %v630
  %763 = vmatprep.subr.mxu0 0.0
  %764 = vmatpush1.msra.mxu0 %v629
  %765 = vmatprep.subr.mxu0 0.0
  %766 = vmatpush1.msra.mxu0 %v628
  %767 = vmatprep.subr.mxu0 0.0
  %768 = vmatpush1.msra.mxu0 %v627
  %769 = vmatprep.subr.mxu0 0.0
  %770 = vmatpush1.msra.mxu0 %v626
  %771 = vmatprep.subr.mxu0 0.0
  %772 = vmatpush1.msra.mxu0 %v625
  %773 = vmatprep.subr.mxu0 0.0
  %774 = vmatpush1.msra.mxu0 %v624
  %775 = vmatprep.subr.mxu0 0.0
  %776 = vmatpush1.msra.mxu0 %v623
  %777 = vmatprep.subr.mxu0 0.0
  %778 = vmatpush2.msra.mxu0 0.0
  %779 = vmatprep.subr.mxu0 0.0
  %780 = vmatpush2.msra.mxu0 0.0
  %781 = vmatprep.subr.mxu0 0.0
  %782 = vmatpush2.msra.mxu0 0.0
  %783 = vmatprep.subr.mxu0 0.0
  %784 = vmatpush2.msra.mxu0 0.0
  %785 = vmatprep.subr.mxu0 0.0
  %786 = vmatpush2.msra.mxu0 0.0
  %787 = vmatprep.subr.mxu0 0.0
  %788 = vmatpush2.msra.mxu0 0.0
  %789 = vmatprep.subr.mxu0 0.0
  %790 = vmatpush2.msra.mxu0 0.0
  %791 = vmatprep.subr.mxu0 0.0
  %792 = vmatpush2.msra.mxu0 0.0
  %793 = vmatprep.subr.mxu0 0.0
  %794 = vmatpush2.msra.mxu0 0.0
  %795 = vmatprep.subr.mxu0 0.0
  %796 = vmatpush2.msra.mxu0 0.0
  %797 = vmatprep.subr.mxu0 0.0
  %798 = vmatpush2.msra.mxu0 0.0
  %799 = vmatprep.subr.mxu0 0.0
  %800 = vmatpush2.msra.mxu0 0.0
  %801 = vmatprep.subr.mxu0 0.0
  %802 = vmatpush2.msra.mxu0 0.0
  %803 = vmatprep.subr.mxu0 0.0
  %804 = vmatpush2.msra.mxu0 0.0
  %805 = vmatprep.subr.mxu0 0.0
  %806 = vmatpush2.msra.mxu0 0.0
  %807 = vmatprep.subr.mxu0 0.0
  %808 = vmatpush2.msra.mxu0 0.0
  %809 = vmatprep.mubr.f32.mxu0 0.0
  %810 = vmatmul.mubr.f32.gmra.mxu0 %v619
  %v811 = vpop.f32.mrf.mxu0
  %v812 = vadd.f32 %v727, %v811
  %v813 = vpop.f32.mrf.mxu0
  %814 = vmatprep.mubr.f32.mxu0 0.0
  %815 = vmatmul.mubr.f32.gmra.mxu0 %v620
  %v816 = vpop.f32.mrf.mxu0
  %v817 = vadd.f32 %v732, %v816
  %v818 = vpop.f32.mrf.mxu0
  %819 = vmatprep.mubr.f32.mxu0 0.0
  %820 = vmatmul.mubr.f32.gmra.mxu0 %v621
  %v821 = vpop.f32.mrf.mxu0
  %v822 = vadd.f32 %v737, %v821
  %v823 = vpop.f32.mrf.mxu0
  %824 = vmatprep.mubr.f32.mxu0 0.0
  %825 = vmatmul.mubr.f32.gmra.mxu0 %v622
  %v826 = vpop.f32.mrf.mxu0
  %v827 = vadd.f32 %v742, %v826
  %v828 = vpop.f32.mrf.mxu0
  %829 = vdwg.mxu0
  %v830 = vld [vmem:[#allocation3 + $0x2] sm:$0xff]
  %v831 = vld [vmem:[#allocation3 + $0xa] sm:$0xff]
  %v832 = vld [vmem:[#allocation3 + $0x1a] sm:$0xff]
  %v833 = vld [vmem:[#allocation3 + $0x22] sm:$0xff]
  %s834 = scalar_lea.vmem %s5, 256
  %v835 = vld [vmem:[%s834] sm:$0xff]
  %v836 = vld [vmem:[%s834 + $0x8] sm:$0xff]
  %v837 = vld [vmem:[%s834 + $0x10] sm:$0xff]
  %v838 = vld [vmem:[%s834 + $0x18] sm:$0xff]
  %v839 = vld [vmem:[%s834 + $0x20] sm:$0xff]
  %v840 = vld [vmem:[%s834 + $0x28] sm:$0xff]
  %v841 = vld [vmem:[%s834 + $0x30] sm:$0xff]
  %v842 = vld [vmem:[%s834 + $0x38] sm:$0xff]
  %v843 = vld [vmem:[%s834 + $0x40] sm:$0xff]
  %v844 = vld [vmem:[%s834 + $0x48] sm:$0xff]
  %v845 = vld [vmem:[%s834 + $0x50] sm:$0xff]
  %v846 = vld [vmem:[%s834 + $0x58] sm:$0xff]
  %v847 = vld [vmem:[%s834 + $0x60] sm:$0xff]
  %v848 = vld [vmem:[%s834 + $0x68] sm:$0xff]
  %v849 = vld [vmem:[%s834 + $0x70] sm:$0xff]
  %v850 = vld [vmem:[%s834 + $0x78] sm:$0xff]
  %851 = vmatprep.subr.mxu0 0.0
  %852 = vmatpush1.msra.mxu0 %v850
  %853 = vmatprep.subr.mxu0 0.0
  %854 = vmatpush1.msra.mxu0 %v849
  %855 = vmatprep.subr.mxu0 0.0
  %856 = vmatpush1.msra.mxu0 %v848
  %857 = vmatprep.subr.mxu0 0.0
  %858 = vmatpush1.msra.mxu0 %v847
  %859 = vmatprep.subr.mxu0 0.0
  %860 = vmatpush1.msra.mxu0 %v846
  %861 = vmatprep.subr.mxu0 0.0
  %862 = vmatpush1.msra.mxu0 %v845
  %863 = vmatprep.subr.mxu0 0.0
  %864 = vmatpush1.msra.mxu0 %v844
  %865 = vmatprep.subr.mxu0 0.0
  %866 = vmatpush1.msra.mxu0 %v843
  %867 = vmatprep.subr.mxu0 0.0
  %868 = vmatpush1.msra.mxu0 %v842
  %869 = vmatprep.subr.mxu0 0.0
  %870 = vmatpush1.msra.mxu0 %v841
  %871 = vmatprep.subr.mxu0 0.0
  %872 = vmatpush1.msra.mxu0 %v840
  %873 = vmatprep.subr.mxu0 0.0
  %874 = vmatpush1.msra.mxu0 %v839
  %875 = vmatprep.subr.mxu0 0.0
  %876 = vmatpush1.msra.mxu0 %v838
  %877 = vmatprep.subr.mxu0 0.0
  %878 = vmatpush1.msra.mxu0 %v837
  %879 = vmatprep.subr.mxu0 0.0
  %880 = vmatpush1.msra.mxu0 %v836
  %881 = vmatprep.subr.mxu0 0.0
  %882 = vmatpush1.msra.mxu0 %v835
  %883 = vmatprep.subr.mxu0 0.0
  %884 = vmatpush2.msra.mxu0 0.0
  %885 = vmatprep.subr.mxu0 0.0
  %886 = vmatpush2.msra.mxu0 0.0
  %887 = vmatprep.subr.mxu0 0.0
  %888 = vmatpush2.msra.mxu0 0.0
  %889 = vmatprep.subr.mxu0 0.0
  %890 = vmatpush2.msra.mxu0 0.0
  %891 = vmatprep.subr.mxu0 0.0
  %892 = vmatpush2.msra.mxu0 0.0
  %893 = vmatprep.subr.mxu0 0.0
  %894 = vmatpush2.msra.mxu0 0.0
  %895 = vmatprep.subr.mxu0 0.0
  %896 = vmatpush2.msra.mxu0 0.0
  %897 = vmatprep.subr.mxu0 0.0
  %898 = vmatpush2.msra.mxu0 0.0
  %899 = vmatprep.subr.mxu0 0.0
  %900 = vmatpush2.msra.mxu0 0.0
  %901 = vmatprep.subr.mxu0 0.0
  %902 = vmatpush2.msra.mxu0 0.0
  %903 = vmatprep.subr.mxu0 0.0
  %904 = vmatpush2.msra.mxu0 0.0
  %905 = vmatprep.subr.mxu0 0.0
  %906 = vmatpush2.msra.mxu0 0.0
  %907 = vmatprep.subr.mxu0 0.0
  %908 = vmatpush2.msra.mxu0 0.0
  %909 = vmatprep.subr.mxu0 0.0
  %910 = vmatpush2.msra.mxu0 0.0
  %911 = vmatprep.subr.mxu0 0.0
  %912 = vmatpush2.msra.mxu0 0.0
  %913 = vmatprep.subr.mxu0 0.0
  %914 = vmatpush2.msra.mxu0 0.0
  %915 = vmatprep.mubr.f32.mxu0 0.0
  %916 = vmatmul.mubr.f32.gmra.mxu0 %v830
  %v917 = vpop.f32.mrf.mxu0
  %v918 = vadd.f32 0.0, %v917
  %v919 = vpop.f32.mrf.mxu0
  %920 = vmatprep.mubr.f32.mxu0 0.0
  %921 = vmatmul.mubr.f32.gmra.mxu0 %v831
  %v922 = vpop.f32.mrf.mxu0
  %v923 = vadd.f32 0.0, %v922
  %v924 = vpop.f32.mrf.mxu0
  %925 = vmatprep.mubr.f32.mxu0 0.0
  %926 = vmatmul.mubr.f32.gmra.mxu0 %v832
  %v927 = vpop.f32.mrf.mxu0
  %v928 = vadd.f32 0.0, %v927
  %v929 = vpop.f32.mrf.mxu0
  %930 = vmatprep.mubr.f32.mxu0 0.0
  %931 = vmatmul.mubr.f32.gmra.mxu0 %v833
  %v932 = vpop.f32.mrf.mxu0
  %v933 = vadd.f32 0.0, %v932
  %v934 = vpop.f32.mrf.mxu0
  %935 = vdwg.mxu0
  %v936 = vadd.f32 %v812, %v918
  %v937 = vadd.f32 %v817, %v923
  %v938 = vadd.f32 %v822, %v928
  %v939 = vadd.f32 %v827, %v933
  %v940 = vld [vmem:[%s6] sm:$0x1]
  %v942 = vlaneseq
  %v943 = vshrl.u32 %v942, 7
  %v944 = vsub.s32 0, %v943
  %v945 = vrot.slane %v940, %v944
  %v947 = vadd.f32 %v936, %v945
  %v948 = vadd.f32 %v937, %v945
  %v949 = vadd.f32 %v938, %v945
  %v950 = vadd.f32 %v939, %v945
  %v951 = vmax.f32 %v947, 0.0
  %v952 = vmax.f32 %v948, 0.0
  %v953 = vmax.f32 %v949, 0.0
  %v954 = vmax.f32 %v950, 0.0
  %v955 = vld [vmem:[%s7] sm:$0x1]
  %v956 = vld [vmem:[%s8] sm:$0x1]
  %v957 = vadd.f32 %v951, %v952
  %v958 = vadd.f32 %v957, %v953
  %v959 = vadd.f32 %v958, %v954
  %v960 = vrot.slane %v959, 4
  %v961 = vadd.f32 %v959, %v960
  %v962 = vrot.slane %v961, 2
  %v963 = vadd.f32 %v961, %v962
  %v964 = vrot.slane %v963, 1
  %v965 = vadd.f32 %v963, %v964
  %v966 = vmul.f32 %v951, %v951
  %v967 = vmul.f32 %v952, %v952
  %v968 = vmul.f32 %v953, %v953
  %v969 = vmul.f32 %v954, %v954
  %v970 = vadd.f32 %v966, %v967
  %v971 = vadd.f32 %v970, %v968
  %v972 = vadd.f32 %v971, %v969
  %v973 = vrot.slane %v972, 4
  %v974 = vadd.f32 %v972, %v973
  %v975 = vrot.slane %v974, 2
  %v976 = vadd.f32 %v974, %v975
  %v977 = vrot.slane %v976, 1
  %v978 = vadd.f32 %v976, %v977
  %v979 = vld [vmem:[%s9] sm:$0xff]
  %v980 = vld [vmem:[%s9 + $0x8] sm:$0xff]
  %v981 = vld [vmem:[%s9 + $0x10] sm:$0xff]
  %v982 = vld [vmem:[%s9 + $0x18] sm:$0xff]
  %v983 = vld [vmem:[%s9 + $0x20] sm:$0xff]
  %v984 = vld [vmem:[%s9 + $0x28] sm:$0xff]
  %v985 = vld [vmem:[%s9 + $0x30] sm:$0xff]
  %v986 = vld [vmem:[%s9 + $0x38] sm:$0xff]
  %v987 = vld [vmem:[%s9 + $0x40] sm:$0xff]
  %v988 = vld [vmem:[%s9 + $0x48] sm:$0xff]
  %v989 = vld [vmem:[%s9 + $0x50] sm:$0xff]
  %v990 = vld [vmem:[%s9 + $0x58] sm:$0xff]
  %v991 = vld [vmem:[%s9 + $0x60] sm:$0xff]
  %v992 = vld [vmem:[%s9 + $0x68] sm:$0xff]
  %v993 = vld [vmem:[%s9 + $0x70] sm:$0xff]
  %v994 = vld [vmem:[%s9 + $0x78] sm:$0xff]
  %995 = vmatprep.subr.mxu0 0.0
  %996 = vmatpush1.msra.mxu0 %v994
  %997 = vmatprep.subr.mxu0 0.0
  %998 = vmatpush1.msra.mxu0 %v993
  %999 = vmatprep.subr.mxu0 0.0
  %1000 = vmatpush1.msra.mxu0 %v992
  %1001 = vmatprep.subr.mxu0 0.0
  %1002 = vmatpush1.msra.mxu0 %v991
  %1003 = vmatprep.subr.mxu0 0.0
  %1004 = vmatpush1.msra.mxu0 %v990
  %1005 = vmatprep.subr.mxu0 0.0
  %1006 = vmatpush1.msra.mxu0 %v989
  %1007 = vmatprep.subr.mxu0 0.0
  %1008 = vmatpush1.msra.mxu0 %v988
  %1009 = vmatprep.subr.mxu0 0.0
  %1010 = vmatpush1.msra.mxu0 %v987
  %1011 = vmatprep.subr.mxu0 0.0
  %1012 = vmatpush1.msra.mxu0 %v986
  %1013 = vmatprep.subr.mxu0 0.0
  %1014 = vmatpush1.msra.mxu0 %v985
  %1015 = vmatprep.subr.mxu0 0.0
  %1016 = vmatpush1.msra.mxu0 %v984
  %1017 = vmatprep.subr.mxu0 0.0
  %1018 = vmatpush1.msra.mxu0 %v983
  %1019 = vmatprep.subr.mxu0 0.0
  %1020 = vmatpush1.msra.mxu0 %v982
  %1021 = vmatprep.subr.mxu0 0.0
  %1022 = vmatpush1.msra.mxu0 %v981
  %1023 = vmatprep.subr.mxu0 0.0
  %1024 = vmatpush1.msra.mxu0 %v980
  %1025 = vmatprep.subr.mxu0 0.0
  %1026 = vmatpush1.msra.mxu0 %v979
  %1027 = vmatprep.subr.mxu0 0.0
  %1028 = vmatpush2.msra.mxu0 0.0
  %1029 = vmatprep.subr.mxu0 0.0
  %1030 = vmatpush2.msra.mxu0 0.0
  %1031 = vmatprep.subr.mxu0 0.0
  %1032 = vmatpush2.msra.mxu0 0.0
  %1033 = vmatprep.subr.mxu0 0.0
  %1034 = vmatpush2.msra.mxu0 0.0
  %1035 = vmatprep.subr.mxu0 0.0
  %1036 = vmatpush2.msra.mxu0 0.0
  %1037 = vmatprep.subr.mxu0 0.0
  %1038 = vmatpush2.msra.mxu0 0.0
  %1039 = vmatprep.subr.mxu0 0.0
  %1040 = vmatpush2.msra.mxu0 0.0
  %1041 = vmatprep.subr.mxu0 0.0
  %1042 = vmatpush2.msra.mxu0 0.0
  %1043 = vmatprep.subr.mxu0 0.0
  %1044 = vmatpush2.msra.mxu0 0.0
  %1045 = vmatprep.subr.mxu0 0.0
  %1046 = vmatpush2.msra.mxu0 0.0
  %1047 = vmatprep.subr.mxu0 0.0
  %1048 = vmatpush2.msra.mxu0 0.0
  %1049 = vmatprep.subr.mxu0 0.0
  %1050 = vmatpush2.msra.mxu0 0.0
  %1051 = vmatprep.subr.mxu0 0.0
  %1052 = vmatpush2.msra.mxu0 0.0
  %1053 = vmatprep.subr.mxu0 0.0
  %1054 = vmatpush2.msra.mxu0 0.0
  %1055 = vmatprep.subr.mxu0 0.0
  %1056 = vmatpush2.msra.mxu0 0.0
  %1057 = vmatprep.subr.mxu0 0.0
  %1058 = vmatpush2.msra.mxu0 0.0
  %1059 = vmatprep.mubr.f32.mxu0 0.0
  %1060 = vmatmul.mubr.f32.gmra.mxu0 %v965
  %v1061 = vpop.f32.mrf.mxu0
  %v1062 = vadd.f32 0.0, %v1061
  %v1063 = vpop.f32.mrf.mxu0
  %1064 = vdwg.mxu0
  %v1065 = vmul.f32 %v1062, %v507
  %1066 = vmatprep.subr.mxu0 0.0
  %1067 = vmatpush1.msra.mxu0 %v994
  %1068 = vmatprep.subr.mxu0 0.0
  %1069 = vmatpush1.msra.mxu0 %v993
  %1070 = vmatprep.subr.mxu0 0.0
  %1071 = vmatpush1.msra.mxu0 %v992
  %1072 = vmatprep.subr.mxu0 0.0
  %1073 = vmatpush1.msra.mxu0 %v991
  %1074 = vmatprep.subr.mxu0 0.0
  %1075 = vmatpush1.msra.mxu0 %v990
  %1076 = vmatprep.subr.mxu0 0.0
  %1077 = vmatpush1.msra.mxu0 %v989
  %1078 = vmatprep.subr.mxu0 0.0
  %1079 = vmatpush1.msra.mxu0 %v988
  %1080 = vmatprep.subr.mxu0 0.0
  %1081 = vmatpush1.msra.mxu0 %v987
  %1082 = vmatprep.subr.mxu0 0.0
  %1083 = vmatpush1.msra.mxu0 %v986
  %1084 = vmatprep.subr.mxu0 0.0
  %1085 = vmatpush1.msra.mxu0 %v985
  %1086 = vmatprep.subr.mxu0 0.0
  %1087 = vmatpush1.msra.mxu0 %v984
  %1088 = vmatprep.subr.mxu0 0.0
  %1089 = vmatpush1.msra.mxu0 %v983
  %1090 = vmatprep.subr.mxu0 0.0
  %1091 = vmatpush1.msra.mxu0 %v982
  %1092 = vmatprep.subr.mxu0 0.0
  %1093 = vmatpush1.msra.mxu0 %v981
  %1094 = vmatprep.subr.mxu0 0.0
  %1095 = vmatpush1.msra.mxu0 %v980
  %1096 = vmatprep.subr.mxu0 0.0
  %1097 = vmatpush1.msra.mxu0 %v979
  %1098 = vmatprep.subr.mxu0 0.0
  %1099 = vmatpush2.msra.mxu0 0.0
  %1100 = vmatprep.subr.mxu0 0.0
  %1101 = vmatpush2.msra.mxu0 0.0
  %1102 = vmatprep.subr.mxu0 0.0
  %1103 = vmatpush2.msra.mxu0 0.0
  %1104 = vmatprep.subr.mxu0 0.0
  %1105 = vmatpush2.msra.mxu0 0.0
  %1106 = vmatprep.subr.mxu0 0.0
  %1107 = vmatpush2.msra.mxu0 0.0
  %1108 = vmatprep.subr.mxu0 0.0
  %1109 = vmatpush2.msra.mxu0 0.0
  %1110 = vmatprep.subr.mxu0 0.0
  %1111 = vmatpush2.msra.mxu0 0.0
  %1112 = vmatprep.subr.mxu0 0.0
  %1113 = vmatpush2.msra.mxu0 0.0
  %1114 = vmatprep.subr.mxu0 0.0
  %1115 = vmatpush2.msra.mxu0 0.0
  %1116 = vmatprep.subr.mxu0 0.0
  %1117 = vmatpush2.msra.mxu0 0.0
  %1118 = vmatprep.subr.mxu0 0.0
  %1119 = vmatpush2.msra.mxu0 0.0
  %1120 = vmatprep.subr.mxu0 0.0
  %1121 = vmatpush2.msra.mxu0 0.0
  %1122 = vmatprep.subr.mxu0 0.0
  %1123 = vmatpush2.msra.mxu0 0.0
  %1124 = vmatprep.subr.mxu0 0.0
  %1125 = vmatpush2.msra.mxu0 0.0
  %1126 = vmatprep.subr.mxu0 0.0
  %1127 = vmatpush2.msra.mxu0 0.0
  %1128 = vmatprep.subr.mxu0 0.0
  %1129 = vmatpush2.msra.mxu0 0.0
  %1130 = vmatprep.mubr.f32.mxu0 0.0
  %1131 = vmatmul.mubr.f32.gmra.mxu0 %v978
  %v1132 = vpop.f32.mrf.mxu0
  %v1133 = vadd.f32 0.0, %v1132
  %v1134 = vpop.f32.mrf.mxu0
  %1135 = vdwg.mxu0
  %v1136 = vmul.f32 %v1133, %v507
  %v1137 = vmul.f32 %v1065, %v1065
  %v1138 = vsub.f32 %v1136, %v1137
  %v1139 = vadd.f32 %v1138, 1e-05
  %v1140 = vrsqrt.pop %v1139
  %v1141 = vlaneseq
  %v1142 = vshrl.u32 %v1141, 7
  %v1143 = vsub.s32 0, %v1142
  %v1144 = vrot.slane %v1065, %v1143
  %v1145 = vsub.f32 %v951, %v1144
  %v1146 = vsub.f32 %v952, %v1144
  %v1147 = vsub.f32 %v953, %v1144
  %v1148 = vsub.f32 %v954, %v1144
  %v1149 = vmul.f32 %v1140, %v955
  %v1150 = vlaneseq
  %v1151 = vshrl.u32 %v1150, 7
  %v1152 = vsub.s32 0, %v1151
  %v1153 = vrot.slane %v1149, %v1152
  %v1154 = vmul.f32 %v1145, %v1153
  %v1155 = vmul.f32 %v1146, %v1153
  %v1156 = vmul.f32 %v1147, %v1153
  %v1157 = vmul.f32 %v1148, %v1153
  %v1159 = vlaneseq
  %v1160 = vshrl.u32 %v1159, 7
  %v1161 = vsub.s32 0, %v1160
  %v1162 = vrot.slane %v956, %v1161
  %v1164 = vadd.f32 %v1154, %v1162
  %v1165 = vadd.f32 %v1155, %v1162
  %v1166 = vadd.f32 %v1156, %v1162
  %v1167 = vadd.f32 %v1157, %v1162
  %1168 = vst [vmem:[%s10] sm:$0xff] %v1164
  %1169 = vst [vmem:[%s10 + $0x8] sm:$0xff] %v1165
  %1170 = vst [vmem:[%s10 + $0x10] sm:$0xff] %v1166
  %1171 = vst [vmem:[%s10 + $0x18] sm:$0xff] %v1167
  // Predicated region
  $region42: #{unet_conv_block.1} parent=0 // pred_check
    _
  $region43: #{unet_conv_block.1} parent=0 // pred_check_branch
    %1173 = sbr.rel (0) target = $region45
  $region44: #{unet_conv_block.1} parent=0 // pred_region
    _
  $region45: #{unet_conv_block.1} parent=0 // pred_fallthru
    _
  // Predicated region
  $region46: #{unet_conv_block.1} parent=0 // pred_check
    _
  $region47: #{unet_conv_block.1} parent=0 // pred_check_branch
    %1175 = sbr.rel (0) target = $region49
  $region48: #{unet_conv_block.1} parent=0 // pred_region
    _
  $region49: #{unet_conv_block.1} parent=0 // pred_fallthru
    _

</llo_original>
